<compile_context>
chip_gen: v7x
topology: tpu7x:2x2x1
jax: 0.10.0
libtpu: 0.0.40
codegen_flags: <defaults>
</compile_context>

<pallas_src>
import math
from functools import partial

import jax
import jax.numpy as jnp
from jax import lax
from jax.experimental import pallas as pl
from jax.experimental.pallas import tpu as pltpu


# ---------------------------------------------------------------------------
# Fused scalar-attention kernel: both attentions (size estimation + pooling
# weights), all heads, one grid step per batch element.
# ---------------------------------------------------------------------------
def _fused_attn_kernel(num_heads, head_dim, h_ref, wq_ref, wk_ref, wvo_ref,
                       size_out_ref, pool_out_ref):
    h = h_ref[0].astype(jnp.float32)                                   # (S, H)
    seq_len = h.shape[0]

    # Fused projections for both attentions / all heads (big-N MXU matmuls).
    q = jnp.dot(h, wq_ref[...].astype(jnp.float32),
                preferred_element_type=jnp.float32)                    # (S, 2*nH*hd)
    k = jnp.dot(h, wk_ref[...].astype(jnp.float32),
                preferred_element_type=jnp.float32)                    # (S, 2*nH*hd)
    # Folded (v_proj @ o_proj) scalar value per token, row-form: (2*nH, S).
    # wvo_ref is pre-transposed on the host -> native A @ B^T contraction, no in-kernel transpose.
    vsc_t = lax.dot_general(wvo_ref[...].astype(jnp.float32), h,
                            (((1,), (1,)), ((), ())),
                            preferred_element_type=jnp.float32)        # (2*nH, S)

    scale = 1.0 / math.sqrt(head_dim)

    # TODO(synk): for production S, tile this softmax flash-style over KV chunks instead of
    # forming (S, S) per head at once (v7x VMEM budget); fine at these shapes.
    def one_attention(a):
        acc = jnp.zeros((1, seq_len), jnp.float32)                     # lane-dense accumulator
        for hh in range(num_heads):
            idx = a * num_heads + hh
            qh = q[:, idx * head_dim:(idx + 1) * head_dim]             # (S, hd)
            kh = k[:, idx * head_dim:(idx + 1) * head_dim]             # (S, hd)
            # q @ k^T without materializing a transpose.
            s = lax.dot_general(qh, kh, (((1,), (1,)), ((), ())),
                                preferred_element_type=jnp.float32) * scale
            s = s - jnp.max(s, axis=-1, keepdims=True)
            e = jnp.exp(s)
            p = e * pl.reciprocal(jnp.sum(e, axis=-1, keepdims=True), approx=True)
            # Row-form head contribution: (1,S_k) contracted with p over S_k -> (1,S_q).
            acc = acc + lax.dot_general(vsc_t[idx:idx + 1, :], p,
                                        (((1,), (1,)), ((), ())),
                                        preferred_element_type=jnp.float32)
        return acc

    size_out_ref[0] = one_attention(0)                                 # (1, S)
    pool_out_ref[0] = one_attention(1)                                 # (1, S)


def _fuse_attention_weights(params, num_heads, num_kv_heads, head_dim, hidden_size):
    """Host-side weight prep: GQA repeat for k, fold o_proj into v_proj, fuse both attentions."""
    groups = num_heads // num_kv_heads

    def prep(prefix):
        wq = params[f"{prefix}_wq"]                                        # (H, nH*hd)
        wk = params[f"{prefix}_wk"].reshape(hidden_size, num_kv_heads, head_dim)
        wv = params[f"{prefix}_wv"].reshape(hidden_size, num_kv_heads, head_dim)
        wo = params[f"{prefix}_wo"].reshape(num_heads, head_dim)
        wk_rep = jnp.repeat(wk, groups, axis=1).reshape(hidden_size, num_heads * head_dim)
        wv_rep = jnp.repeat(wv, groups, axis=1)                            # (H, nH, hd)
        wvo_t = jnp.einsum("hnd,nd->nh", wv_rep, wo)                       # (nH, H)
        return wq, wk_rep, wvo_t

    q_s, k_s, vo_s = prep("size")
    q_p, k_p, vo_p = prep("pool")
    wq_both = jnp.concatenate([q_s, q_p], axis=1)                          # (H, 2*nH*hd)
    wk_both = jnp.concatenate([k_s, k_p], axis=1)                          # (H, 2*nH*hd)
    wvo_both_t = jnp.concatenate([vo_s, vo_p], axis=0)                     # (2*nH, H)
    return wq_both, wk_both, wvo_both_t


def fused_scalar_attention(hidden, wq_both, wk_both, wvo_both_t, num_heads, head_dim):
    """(B,S,H) -> two (B,1,S) f32 scalar attention outputs (size-estimation, pooling)."""
    B, S, H = hidden.shape
    two_nh_hd = wq_both.shape[1]
    two_nh = wvo_both_t.shape[0]
    return pl.pallas_call(
        partial(_fused_attn_kernel, num_heads, head_dim),
        out_shape=(jax.ShapeDtypeStruct((B, 1, S), jnp.float32),
                   jax.ShapeDtypeStruct((B, 1, S), jnp.float32)),
        grid_spec=pltpu.PrefetchScalarGridSpec(
            num_scalar_prefetch=0,
            grid=(B,),
            in_specs=[
                pl.BlockSpec((1, S, H), lambda b: (b, 0, 0)),
                pl.BlockSpec((H, two_nh_hd), lambda b: (0, 0)),
                pl.BlockSpec((H, two_nh_hd), lambda b: (0, 0)),
                pl.BlockSpec((two_nh, H), lambda b: (0, 0)),
            ],
            out_specs=[
                pl.BlockSpec((1, 1, S), lambda b: (b, 0, 0)),
                pl.BlockSpec((1, 1, S), lambda b: (b, 0, 0)),
            ],
        ),
        compiler_params=pltpu.CompilerParams(
            dimension_semantics=("parallel",),
            vmem_limit_bytes=48 * 1024 * 1024),
    )(hidden, wq_both, wk_both, wvo_both_t)


# ---------------------------------------------------------------------------
# Dynamic weighted average pooling kernel.  Grid = (batch,); per-batch dynamic
# output size is scalar-prefetched into SMEM.  The torch per-chunk loop becomes
# a (L, S) weighted selection matrix and MXU matmuls against hidden_states.
# ---------------------------------------------------------------------------
def _pool_kernel(l_pad, seq_len, sizes_ref, h_ref, w_ref, out_ref):
    b = pl.program_id(0)
    out_size = sizes_ref[b]                              # int32 scalar (SMEM)
    offset = l_pad - out_size                            # right-alignment: pooled[b, -out:]

    h = h_ref[0].astype(jnp.float32)                     # (S, H)
    w = w_ref[0]                                         # (1, S) sigmoid weights (f32)

    # O(L) chunk boundary math (column vectors), broadcast against a (1, S) token iota.
    i_col = lax.broadcasted_iota(jnp.int32, (l_pad, 1), 0) - offset      # chunk index; <0 => padding row
    t_row = lax.broadcasted_iota(jnp.int32, (1, seq_len), 1)             # source token index
    step = jnp.float32(seq_len) / out_size.astype(jnp.float32)
    start = jnp.floor(i_col.astype(jnp.float32) * step).astype(jnp.int32)        # (L, 1)
    end = jnp.floor((i_col + 1).astype(jnp.float32) * step).astype(jnp.int32)    # (L, 1)

    valid = (t_row >= start) & (t_row < end) & (i_col >= 0)              # (L, S)
    m = jnp.where(valid, w, 0.0)                                         # weighted selection matrix

    num = jnp.dot(m, h, preferred_element_type=jnp.float32)              # (L, H)  MXU
    den = jnp.dot(m, jnp.ones((seq_len, 1), jnp.float32),
                  preferred_element_type=jnp.float32)                    # (L, 1)  MXU (no XLU reduce)
    # empty / padding chunks have num == 0 exactly, so output is exactly 0 (matches the
    # torch `if chunk_weights.sum() == 0` branch since sigmoid weights are strictly > 0).
    out_ref[0] = (num / (den + 1e-8)).astype(out_ref.dtype)


def dynamic_pool(hidden, attention_weights, dyn_sizes, l_pad):
    B, S, H = hidden.shape
    return pl.pallas_call(
        partial(_pool_kernel, l_pad, S),
        out_shape=jax.ShapeDtypeStruct((B, l_pad, H), hidden.dtype),
        grid_spec=pltpu.PrefetchScalarGridSpec(
            num_scalar_prefetch=1,
            grid=(B,),
            in_specs=[
                pl.BlockSpec((1, S, H), lambda b, sizes: (b, 0, 0)),
                pl.BlockSpec((1, 1, S), lambda b, sizes: (b, 0, 0)),
            ],
            out_specs=pl.BlockSpec((1, l_pad, H), lambda b, sizes: (b, 0, 0)),
        ),
        compiler_params=pltpu.CompilerParams(
            dimension_semantics=("parallel",),
            vmem_limit_bytes=48 * 1024 * 1024),
    )(dyn_sizes, hidden, attention_weights)


# ---------------------------------------------------------------------------
# CcubedDynamicWeightedAvgPool1d.forward
# ---------------------------------------------------------------------------
def ccubed_dynamic_weighted_avg_pool1d(hidden_states, params, *,
                                       num_heads, num_kv_heads, head_dim,
                                       output_size_min, output_size_max):
    B, S, H = hidden_states.shape

    wq_both, wk_both, wvo_both_t = _fuse_attention_weights(
        params, num_heads, num_kv_heads, head_dim, H)

    # One fused kernel: hidden_states read from HBM once for both attentions.
    attn_size, attn_pool = fused_scalar_attention(
        hidden_states, wq_both, wk_both, wvo_both_t, num_heads, head_dim)   # (B,1,S) each

    # size estimation -> dynamic output sizes (int truncation like torch .int())
    batch_attn_means = jax.nn.sigmoid(attn_size[:, 0, :]).mean(axis=1, keepdims=True)  # (B, 1)
    scaled = batch_attn_means * params["scale_param"].astype(batch_attn_means.dtype)
    dyn_sizes = (scaled * (output_size_max - output_size_min)
                 + output_size_min).astype(jnp.int32)[:, 0]                             # (B,)

    # pooling weights are already computed (fused kernel) before the host sync below.
    attention_weights = jax.nn.sigmoid(attn_pool)                                       # (B, 1, S)

    # .max().item() in the reference -> data-dependent output length needs a host sync.
    max_pooled_len = int(jax.device_get(jnp.max(dyn_sizes)))
    # Pad pooled-row axis to a multiple of 8 (sublane aligned, bounded recompile variants);
    # slicing the extra leading (all-padding) rows afterwards is exactly equivalent.
    l_pad = max(8, ((max_pooled_len + 7) // 8) * 8)

    pooled_padded = dynamic_pool(hidden_states, attention_weights, dyn_sizes, l_pad)
    pooled = pooled_padded[:, l_pad - max_pooled_len:, :]                               # (B, L, H)

    attention_mask = (jnp.arange(max_pooled_len)[None, :]
                      >= (max_pooled_len - dyn_sizes)[:, None])                         # (B, L) bool

    return pooled, attention_mask, dyn_sizes


def init_params(key, hidden_size, num_heads, num_kv_heads, head_dim):
    ks = jax.random.split(key, 8)

    def lin(k, fan_in, fan_out):     # torch nn.Linear default-ish init, stored transposed
        bound = 1.0 / math.sqrt(fan_in)
        return jax.random.uniform(k, (fan_in, fan_out), jnp.float32, -bound, bound)

    return {
        "size_wq": lin(ks[0], hidden_size, num_heads * head_dim),
        "size_wk": lin(ks[1], hidden_size, num_kv_heads * head_dim),
        "size_wv": lin(ks[2], hidden_size, num_kv_heads * head_dim),
        "size_wo": lin(ks[3], num_heads * head_dim, 1),
        "pool_wq": lin(ks[4], hidden_size, num_heads * head_dim),
        "pool_wk": lin(ks[5], hidden_size, num_kv_heads * head_dim),
        "pool_wv": lin(ks[6], hidden_size, num_kv_heads * head_dim),
        "pool_wo": lin(ks[7], num_heads * head_dim, 1),
        "scale_param": jnp.float32(0.01),
    }


if __name__ == "__main__":
    # small config consistent with the module: context_config.hidden_size=32,
    # num_attention_heads=4, num_key_value_heads=2, head_dim=8, max_position_embeddings=64
    B, S, H = 2, 16, 32
    num_heads, num_kv_heads, head_dim = 4, 2, 8
    output_size_min = 32
    output_size_max = 64    # config.context_config.max_position_embeddings

    key = jax.random.PRNGKey(0)
    k_x, k_p = jax.random.split(key)
    hidden_states = jax.random.normal(k_x, (B, S, H), jnp.float32)
    params = init_params(k_p, H, num_heads, num_kv_heads, head_dim)

    pooled, mask, sizes = ccubed_dynamic_weighted_avg_pool1d(
        hidden_states, params,
        num_heads=num_heads, num_kv_heads=num_kv_heads, head_dim=head_dim,
        output_size_min=output_size_min, output_size_max=output_size_max)

    jax.block_until_ready((pooled, mask, sizes))
    assert pooled.shape[0] == B and pooled.shape[2] == H
    assert mask.shape == pooled.shape[:2]
    assert sizes.shape == (B,)
    print("KERNEL_OK")
</pallas_src>

<mosaic_0001>
module attributes {stable_mosaic.version = 11 : i64} {
  func.func @_fused_attn_kernel(%arg0: i32, %arg1: memref<1x16x32xf32, #tpu.memory_space<vmem>>, %arg2: memref<32x64xf32, #tpu.memory_space<vmem>>, %arg3: memref<32x64xf32, #tpu.memory_space<vmem>>, %arg4: memref<8x32xf32, #tpu.memory_space<vmem>>, %arg5: memref<1x1x16xf32, #tpu.memory_space<vmem>>, %arg6: memref<1x1x16xf32, #tpu.memory_space<vmem>>) attributes {dimension_semantics = [#tpu.dimension_semantics<parallel>], iteration_bounds = array<i64: 2>, scalar_prefetch = 0 : i64, scratch_operands = 0 : i64, tpu.core_type = #tpu.core_type<tc>, window_params = [{transform_indices = @transform_0, window_bounds = array<i64: 1, 16, 32>}, {pipeline_mode = #tpu.pipeline_mode<synchronous>, transform_indices = @transform_1, window_bounds = array<i64: 32, 64>}, {pipeline_mode = #tpu.pipeline_mode<synchronous>, transform_indices = @transform_2, window_bounds = array<i64: 32, 64>}, {pipeline_mode = #tpu.pipeline_mode<synchronous>, transform_indices = @transform_3, window_bounds = array<i64: 8, 32>}, {transform_indices = @transform_4, window_bounds = array<i64: 1, 1, 16>}, {transform_indices = @transform_5, window_bounds = array<i64: 1, 1, 16>}]} {
    %c0 = arith.constant 0 : index
    %c0_0 = arith.constant 0 : index
    %c0_1 = arith.constant 0 : index
    %0 = vector.load %arg1[%c0, %c0_0, %c0_1] : memref<1x16x32xf32, #tpu.memory_space<vmem>>, vector<1x16x32xf32>
    %1 = vector.shape_cast %0 : vector<1x16x32xf32> to vector<16x32xf32>
    %c0_2 = arith.constant 0 : index
    %c0_3 = arith.constant 0 : index
    %2 = vector.load %arg2[%c0_2, %c0_3] : memref<32x64xf32, #tpu.memory_space<vmem>>, vector<32x64xf32>
    %cst = arith.constant dense<0.000000e+00> : vector<16x64xf32>
    %3 = tpu.matmul %1, %2, %cst {dimension_numbers = #tpu.dot_dimension_numbers<[1], [0], [0], [1], [0, 0, 1, 1], [], []>} : vector<16x32xf32>, vector<32x64xf32>, vector<16x64xf32> -> vector<16x64xf32>
    %c0_4 = arith.constant 0 : index
    %c0_5 = arith.constant 0 : index
    %4 = vector.load %arg3[%c0_4, %c0_5] : memref<32x64xf32, #tpu.memory_space<vmem>>, vector<32x64xf32>
    %cst_6 = arith.constant dense<0.000000e+00> : vector<16x64xf32>
    %5 = tpu.matmul %1, %4, %cst_6 {dimension_numbers = #tpu.dot_dimension_numbers<[1], [0], [0], [1], [0, 0, 1, 1], [], []>} : vector<16x32xf32>, vector<32x64xf32>, vector<16x64xf32> -> vector<16x64xf32>
    %c0_7 = arith.constant 0 : index
    %c0_8 = arith.constant 0 : index
    %6 = vector.load %arg4[%c0_7, %c0_8] : memref<8x32xf32, #tpu.memory_space<vmem>>, vector<8x32xf32>
    %cst_9 = arith.constant dense<0.000000e+00> : vector<8x16xf32>
    %7 = tpu.matmul %6, %1, %cst_9 {dimension_numbers = #tpu.dot_dimension_numbers<[1], [1], [0], [0], [0, 0, 1, 0], [], []>} : vector<8x32xf32>, vector<16x32xf32>, vector<8x16xf32> -> vector<8x16xf32>
    %cst_10 = arith.constant 0.000000e+00 : f32
    %8 = vector.broadcast %cst_10 : f32 to vector<1x16xf32>
    %9 = vector.extract_strided_slice %3 {offsets = [0, 0], sizes = [16, 8], strides = [1, 1]} : vector<16x64xf32> to vector<16x8xf32>
    %10 = vector.extract_strided_slice %5 {offsets = [0, 0], sizes = [16, 8], strides = [1, 1]} : vector<16x64xf32> to vector<16x8xf32>
    %cst_11 = arith.constant dense<0.000000e+00> : vector<16x16xf32>
    %11 = tpu.matmul %9, %10, %cst_11 {dimension_numbers = #tpu.dot_dimension_numbers<[1], [1], [0], [0], [0, 0, 1, 0], [], []>} : vector<16x8xf32>, vector<16x8xf32>, vector<16x16xf32> -> vector<16x16xf32>
    %cst_12 = arith.constant 0.353553385 : f32
    %12 = vector.broadcast %cst_12 : f32 to vector<16x16xf32>
    %13 = arith.mulf %11, %12 : vector<16x16xf32>
    %cst_13 = arith.constant dense<0xFF800000> : vector<16xf32>
    %14 = vector.multi_reduction <maximumf>, %13, %cst_13 [1] : vector<16x16xf32> to vector<16xf32>
    %15 = vector.shape_cast %14 : vector<16xf32> to vector<16x1xf32>
    %16 = vector.broadcast %15 : vector<16x1xf32> to vector<16x16xf32>
    %17 = arith.subf %13, %16 : vector<16x16xf32>
    %18 = math.exp %17 : vector<16x16xf32>
    %cst_14 = arith.constant dense<0.000000e+00> : vector<16xf32>
    %19 = vector.multi_reduction <add>, %18, %cst_14 [1] : vector<16x16xf32> to vector<16xf32>
    %20 = vector.shape_cast %19 : vector<16xf32> to vector<16x1xf32>
    %21 = tpu.reciprocal %20 {approx = true} : vector<16x1xf32> -> vector<16x1xf32>
    %22 = vector.broadcast %21 : vector<16x1xf32> to vector<16x16xf32>
    %23 = arith.mulf %18, %22 : vector<16x16xf32>
    %24 = vector.extract_strided_slice %7 {offsets = [0, 0], sizes = [1, 16], strides = [1, 1]} : vector<8x16xf32> to vector<1x16xf32>
    %cst_15 = arith.constant dense<0.000000e+00> : vector<1x16xf32>
    %25 = tpu.matmul %24, %23, %cst_15 {dimension_numbers = #tpu.dot_dimension_numbers<[1], [1], [0], [0], [0, 0, 1, 0], [], []>} : vector<1x16xf32>, vector<16x16xf32>, vector<1x16xf32> -> vector<1x16xf32>
    %26 = arith.addf %8, %25 : vector<1x16xf32>
    %27 = vector.extract_strided_slice %3 {offsets = [0, 8], sizes = [16, 8], strides = [1, 1]} : vector<16x64xf32> to vector<16x8xf32>
    %28 = vector.extract_strided_slice %5 {offsets = [0, 8], sizes = [16, 8], strides = [1, 1]} : vector<16x64xf32> to vector<16x8xf32>
    %cst_16 = arith.constant dense<0.000000e+00> : vector<16x16xf32>
    %29 = tpu.matmul %27, %28, %cst_16 {dimension_numbers = #tpu.dot_dimension_numbers<[1], [1], [0], [0], [0, 0, 1, 0], [], []>} : vector<16x8xf32>, vector<16x8xf32>, vector<16x16xf32> -> vector<16x16xf32>
    %cst_17 = arith.constant 0.353553385 : f32
    %30 = vector.broadcast %cst_17 : f32 to vector<16x16xf32>
    %31 = arith.mulf %29, %30 : vector<16x16xf32>
    %cst_18 = arith.constant dense<0xFF800000> : vector<16xf32>
    %32 = vector.multi_reduction <maximumf>, %31, %cst_18 [1] : vector<16x16xf32> to vector<16xf32>
    %33 = vector.shape_cast %32 : vector<16xf32> to vector<16x1xf32>
    %34 = vector.broadcast %33 : vector<16x1xf32> to vector<16x16xf32>
    %35 = arith.subf %31, %34 : vector<16x16xf32>
    %36 = math.exp %35 : vector<16x16xf32>
    %cst_19 = arith.constant dense<0.000000e+00> : vector<16xf32>
    %37 = vector.multi_reduction <add>, %36, %cst_19 [1] : vector<16x16xf32> to vector<16xf32>
    %38 = vector.shape_cast %37 : vector<16xf32> to vector<16x1xf32>
    %39 = tpu.reciprocal %38 {approx = true} : vector<16x1xf32> -> vector<16x1xf32>
    %40 = vector.broadcast %39 : vector<16x1xf32> to vector<16x16xf32>
    %41 = arith.mulf %36, %40 : vector<16x16xf32>
    %42 = vector.extract_strided_slice %7 {offsets = [1, 0], sizes = [1, 16], strides = [1, 1]} : vector<8x16xf32> to vector<1x16xf32>
    %cst_20 = arith.constant dense<0.000000e+00> : vector<1x16xf32>
    %43 = tpu.matmul %42, %41, %cst_20 {dimension_numbers = #tpu.dot_dimension_numbers<[1], [1], [0], [0], [0, 0, 1, 0], [], []>} : vector<1x16xf32>, vector<16x16xf32>, vector<1x16xf32> -> vector<1x16xf32>
    %44 = arith.addf %26, %43 : vector<1x16xf32>
    %45 = vector.extract_strided_slice %3 {offsets = [0, 16], sizes = [16, 8], strides = [1, 1]} : vector<16x64xf32> to vector<16x8xf32>
    %46 = vector.extract_strided_slice %5 {offsets = [0, 16], sizes = [16, 8], strides = [1, 1]} : vector<16x64xf32> to vector<16x8xf32>
    %cst_21 = arith.constant dense<0.000000e+00> : vector<16x16xf32>
    %47 = tpu.matmul %45, %46, %cst_21 {dimension_numbers = #tpu.dot_dimension_numbers<[1], [1], [0], [0], [0, 0, 1, 0], [], []>} : vector<16x8xf32>, vector<16x8xf32>, vector<16x16xf32> -> vector<16x16xf32>
    %cst_22 = arith.constant 0.353553385 : f32
    %48 = vector.broadcast %cst_22 : f32 to vector<16x16xf32>
    %49 = arith.mulf %47, %48 : vector<16x16xf32>
    %cst_23 = arith.constant dense<0xFF800000> : vector<16xf32>
    %50 = vector.multi_reduction <maximumf>, %49, %cst_23 [1] : vector<16x16xf32> to vector<16xf32>
    %51 = vector.shape_cast %50 : vector<16xf32> to vector<16x1xf32>
    %52 = vector.broadcast %51 : vector<16x1xf32> to vector<16x16xf32>
    %53 = arith.subf %49, %52 : vector<16x16xf32>
    %54 = math.exp %53 : vector<16x16xf32>
    %cst_24 = arith.constant dense<0.000000e+00> : vector<16xf32>
    %55 = vector.multi_reduction <add>, %54, %cst_24 [1] : vector<16x16xf32> to vector<16xf32>
    %56 = vector.shape_cast %55 : vector<16xf32> to vector<16x1xf32>
    %57 = tpu.reciprocal %56 {approx = true} : vector<16x1xf32> -> vector<16x1xf32>
    %58 = vector.broadcast %57 : vector<16x1xf32> to vector<16x16xf32>
    %59 = arith.mulf %54, %58 : vector<16x16xf32>
    %60 = vector.extract_strided_slice %7 {offsets = [2, 0], sizes = [1, 16], strides = [1, 1]} : vector<8x16xf32> to vector<1x16xf32>
    %cst_25 = arith.constant dense<0.000000e+00> : vector<1x16xf32>
    %61 = tpu.matmul %60, %59, %cst_25 {dimension_numbers = #tpu.dot_dimension_numbers<[1], [1], [0], [0], [0, 0, 1, 0], [], []>} : vector<1x16xf32>, vector<16x16xf32>, vector<1x16xf32> -> vector<1x16xf32>
    %62 = arith.addf %44, %61 : vector<1x16xf32>
    %63 = vector.extract_strided_slice %3 {offsets = [0, 24], sizes = [16, 8], strides = [1, 1]} : vector<16x64xf32> to vector<16x8xf32>
    %64 = vector.extract_strided_slice %5 {offsets = [0, 24], sizes = [16, 8], strides = [1, 1]} : vector<16x64xf32> to vector<16x8xf32>
    %cst_26 = arith.constant dense<0.000000e+00> : vector<16x16xf32>
    %65 = tpu.matmul %63, %64, %cst_26 {dimension_numbers = #tpu.dot_dimension_numbers<[1], [1], [0], [0], [0, 0, 1, 0], [], []>} : vector<16x8xf32>, vector<16x8xf32>, vector<16x16xf32> -> vector<16x16xf32>
    %cst_27 = arith.constant 0.353553385 : f32
    %66 = vector.broadcast %cst_27 : f32 to vector<16x16xf32>
    %67 = arith.mulf %65, %66 : vector<16x16xf32>
    %cst_28 = arith.constant dense<0xFF800000> : vector<16xf32>
    %68 = vector.multi_reduction <maximumf>, %67, %cst_28 [1] : vector<16x16xf32> to vector<16xf32>
    %69 = vector.shape_cast %68 : vector<16xf32> to vector<16x1xf32>
    %70 = vector.broadcast %69 : vector<16x1xf32> to vector<16x16xf32>
    %71 = arith.subf %67, %70 : vector<16x16xf32>
    %72 = math.exp %71 : vector<16x16xf32>
    %cst_29 = arith.constant dense<0.000000e+00> : vector<16xf32>
    %73 = vector.multi_reduction <add>, %72, %cst_29 [1] : vector<16x16xf32> to vector<16xf32>
    %74 = vector.shape_cast %73 : vector<16xf32> to vector<16x1xf32>
    %75 = tpu.reciprocal %74 {approx = true} : vector<16x1xf32> -> vector<16x1xf32>
    %76 = vector.broadcast %75 : vector<16x1xf32> to vector<16x16xf32>
    %77 = arith.mulf %72, %76 : vector<16x16xf32>
    %78 = vector.extract_strided_slice %7 {offsets = [3, 0], sizes = [1, 16], strides = [1, 1]} : vector<8x16xf32> to vector<1x16xf32>
    %cst_30 = arith.constant dense<0.000000e+00> : vector<1x16xf32>
    %79 = tpu.matmul %78, %77, %cst_30 {dimension_numbers = #tpu.dot_dimension_numbers<[1], [1], [0], [0], [0, 0, 1, 0], [], []>} : vector<1x16xf32>, vector<16x16xf32>, vector<1x16xf32> -> vector<1x16xf32>
    %80 = arith.addf %62, %79 : vector<1x16xf32>
    %c0_31 = arith.constant 0 : index
    %c0_32 = arith.constant 0 : index
    %c0_33 = arith.constant 0 : index
    %81 = vector.load %arg5[%c0_31, %c0_32, %c0_33] : memref<1x1x16xf32, #tpu.memory_space<vmem>>, vector<1x1x16xf32>
    %82 = vector.shape_cast %81 : vector<1x1x16xf32> to vector<1x16xf32>
    %83 = vector.shape_cast %80 : vector<1x16xf32> to vector<1x1x16xf32>
    tpu.vector_store %arg5[%c0_31, %c0_32, %c0_33], %83 {strides = array<i32>} : memref<1x1x16xf32, #tpu.memory_space<vmem>>, vector<1x1x16xf32>,
    %cst_34 = arith.constant 0.000000e+00 : f32
    %84 = vector.broadcast %cst_34 : f32 to vector<1x16xf32>
    %85 = vector.extract_strided_slice %3 {offsets = [0, 32], sizes = [16, 8], strides = [1, 1]} : vector<16x64xf32> to vector<16x8xf32>
    %86 = vector.extract_strided_slice %5 {offsets = [0, 32], sizes = [16, 8], strides = [1, 1]} : vector<16x64xf32> to vector<16x8xf32>
    %cst_35 = arith.constant dense<0.000000e+00> : vector<16x16xf32>
    %87 = tpu.matmul %85, %86, %cst_35 {dimension_numbers = #tpu.dot_dimension_numbers<[1], [1], [0], [0], [0, 0, 1, 0], [], []>} : vector<16x8xf32>, vector<16x8xf32>, vector<16x16xf32> -> vector<16x16xf32>
    %cst_36 = arith.constant 0.353553385 : f32
    %88 = vector.broadcast %cst_36 : f32 to vector<16x16xf32>
    %89 = arith.mulf %87, %88 : vector<16x16xf32>
    %cst_37 = arith.constant dense<0xFF800000> : vector<16xf32>
    %90 = vector.multi_reduction <maximumf>, %89, %cst_37 [1] : vector<16x16xf32> to vector<16xf32>
    %91 = vector.shape_cast %90 : vector<16xf32> to vector<16x1xf32>
    %92 = vector.broadcast %91 : vector<16x1xf32> to vector<16x16xf32>
    %93 = arith.subf %89, %92 : vector<16x16xf32>
    %94 = math.exp %93 : vector<16x16xf32>
    %cst_38 = arith.constant dense<0.000000e+00> : vector<16xf32>
    %95 = vector.multi_reduction <add>, %94, %cst_38 [1] : vector<16x16xf32> to vector<16xf32>
    %96 = vector.shape_cast %95 : vector<16xf32> to vector<16x1xf32>
    %97 = tpu.reciprocal %96 {approx = true} : vector<16x1xf32> -> vector<16x1xf32>
    %98 = vector.broadcast %97 : vector<16x1xf32> to vector<16x16xf32>
    %99 = arith.mulf %94, %98 : vector<16x16xf32>
    %100 = vector.extract_strided_slice %7 {offsets = [4, 0], sizes = [1, 16], strides = [1, 1]} : vector<8x16xf32> to vector<1x16xf32>
    %cst_39 = arith.constant dense<0.000000e+00> : vector<1x16xf32>
    %101 = tpu.matmul %100, %99, %cst_39 {dimension_numbers = #tpu.dot_dimension_numbers<[1], [1], [0], [0], [0, 0, 1, 0], [], []>} : vector<1x16xf32>, vector<16x16xf32>, vector<1x16xf32> -> vector<1x16xf32>
    %102 = arith.addf %84, %101 : vector<1x16xf32>
    %103 = vector.extract_strided_slice %3 {offsets = [0, 40], sizes = [16, 8], strides = [1, 1]} : vector<16x64xf32> to vector<16x8xf32>
    %104 = vector.extract_strided_slice %5 {offsets = [0, 40], sizes = [16, 8], strides = [1, 1]} : vector<16x64xf32> to vector<16x8xf32>
    %cst_40 = arith.constant dense<0.000000e+00> : vector<16x16xf32>
    %105 = tpu.matmul %103, %104, %cst_40 {dimension_numbers = #tpu.dot_dimension_numbers<[1], [1], [0], [0], [0, 0, 1, 0], [], []>} : vector<16x8xf32>, vector<16x8xf32>, vector<16x16xf32> -> vector<16x16xf32>
    %cst_41 = arith.constant 0.353553385 : f32
    %106 = vector.broadcast %cst_41 : f32 to vector<16x16xf32>
    %107 = arith.mulf %105, %106 : vector<16x16xf32>
    %cst_42 = arith.constant dense<0xFF800000> : vector<16xf32>
    %108 = vector.multi_reduction <maximumf>, %107, %cst_42 [1] : vector<16x16xf32> to vector<16xf32>
    %109 = vector.shape_cast %108 : vector<16xf32> to vector<16x1xf32>
    %110 = vector.broadcast %109 : vector<16x1xf32> to vector<16x16xf32>
    %111 = arith.subf %107, %110 : vector<16x16xf32>
    %112 = math.exp %111 : vector<16x16xf32>
    %cst_43 = arith.constant dense<0.000000e+00> : vector<16xf32>
    %113 = vector.multi_reduction <add>, %112, %cst_43 [1] : vector<16x16xf32> to vector<16xf32>
    %114 = vector.shape_cast %113 : vector<16xf32> to vector<16x1xf32>
    %115 = tpu.reciprocal %114 {approx = true} : vector<16x1xf32> -> vector<16x1xf32>
    %116 = vector.broadcast %115 : vector<16x1xf32> to vector<16x16xf32>
    %117 = arith.mulf %112, %116 : vector<16x16xf32>
    %118 = vector.extract_strided_slice %7 {offsets = [5, 0], sizes = [1, 16], strides = [1, 1]} : vector<8x16xf32> to vector<1x16xf32>
    %cst_44 = arith.constant dense<0.000000e+00> : vector<1x16xf32>
    %119 = tpu.matmul %118, %117, %cst_44 {dimension_numbers = #tpu.dot_dimension_numbers<[1], [1], [0], [0], [0, 0, 1, 0], [], []>} : vector<1x16xf32>, vector<16x16xf32>, vector<1x16xf32> -> vector<1x16xf32>
    %120 = arith.addf %102, %119 : vector<1x16xf32>
    %121 = vector.extract_strided_slice %3 {offsets = [0, 48], sizes = [16, 8], strides = [1, 1]} : vector<16x64xf32> to vector<16x8xf32>
    %122 = vector.extract_strided_slice %5 {offsets = [0, 48], sizes = [16, 8], strides = [1, 1]} : vector<16x64xf32> to vector<16x8xf32>
    %cst_45 = arith.constant dense<0.000000e+00> : vector<16x16xf32>
    %123 = tpu.matmul %121, %122, %cst_45 {dimension_numbers = #tpu.dot_dimension_numbers<[1], [1], [0], [0], [0, 0, 1, 0], [], []>} : vector<16x8xf32>, vector<16x8xf32>, vector<16x16xf32> -> vector<16x16xf32>
    %cst_46 = arith.constant 0.353553385 : f32
    %124 = vector.broadcast %cst_46 : f32 to vector<16x16xf32>
    %125 = arith.mulf %123, %124 : vector<16x16xf32>
    %cst_47 = arith.constant dense<0xFF800000> : vector<16xf32>
    %126 = vector.multi_reduction <maximumf>, %125, %cst_47 [1] : vector<16x16xf32> to vector<16xf32>
    %127 = vector.shape_cast %126 : vector<16xf32> to vector<16x1xf32>
    %128 = vector.broadcast %127 : vector<16x1xf32> to vector<16x16xf32>
    %129 = arith.subf %125, %128 : vector<16x16xf32>
    %130 = math.exp %129 : vector<16x16xf32>
    %cst_48 = arith.constant dense<0.000000e+00> : vector<16xf32>
    %131 = vector.multi_reduction <add>, %130, %cst_48 [1] : vector<16x16xf32> to vector<16xf32>
    %132 = vector.shape_cast %131 : vector<16xf32> to vector<16x1xf32>
    %133 = tpu.reciprocal %132 {approx = true} : vector<16x1xf32> -> vector<16x1xf32>
    %134 = vector.broadcast %133 : vector<16x1xf32> to vector<16x16xf32>
    %135 = arith.mulf %130, %134 : vector<16x16xf32>
    %136 = vector.extract_strided_slice %7 {offsets = [6, 0], sizes = [1, 16], strides = [1, 1]} : vector<8x16xf32> to vector<1x16xf32>
    %cst_49 = arith.constant dense<0.000000e+00> : vector<1x16xf32>
    %137 = tpu.matmul %136, %135, %cst_49 {dimension_numbers = #tpu.dot_dimension_numbers<[1], [1], [0], [0], [0, 0, 1, 0], [], []>} : vector<1x16xf32>, vector<16x16xf32>, vector<1x16xf32> -> vector<1x16xf32>
    %138 = arith.addf %120, %137 : vector<1x16xf32>
    %139 = vector.extract_strided_slice %3 {offsets = [0, 56], sizes = [16, 8], strides = [1, 1]} : vector<16x64xf32> to vector<16x8xf32>
    %140 = vector.extract_strided_slice %5 {offsets = [0, 56], sizes = [16, 8], strides = [1, 1]} : vector<16x64xf32> to vector<16x8xf32>
    %cst_50 = arith.constant dense<0.000000e+00> : vector<16x16xf32>
    %141 = tpu.matmul %139, %140, %cst_50 {dimension_numbers = #tpu.dot_dimension_numbers<[1], [1], [0], [0], [0, 0, 1, 0], [], []>} : vector<16x8xf32>, vector<16x8xf32>, vector<16x16xf32> -> vector<16x16xf32>
    %cst_51 = arith.constant 0.353553385 : f32
    %142 = vector.broadcast %cst_51 : f32 to vector<16x16xf32>
    %143 = arith.mulf %141, %142 : vector<16x16xf32>
    %cst_52 = arith.constant dense<0xFF800000> : vector<16xf32>
    %144 = vector.multi_reduction <maximumf>, %143, %cst_52 [1] : vector<16x16xf32> to vector<16xf32>
    %145 = vector.shape_cast %144 : vector<16xf32> to vector<16x1xf32>
    %146 = vector.broadcast %145 : vector<16x1xf32> to vector<16x16xf32>
    %147 = arith.subf %143, %146 : vector<16x16xf32>
    %148 = math.exp %147 : vector<16x16xf32>
    %cst_53 = arith.constant dense<0.000000e+00> : vector<16xf32>
    %149 = vector.multi_reduction <add>, %148, %cst_53 [1] : vector<16x16xf32> to vector<16xf32>
    %150 = vector.shape_cast %149 : vector<16xf32> to vector<16x1xf32>
    %151 = tpu.reciprocal %150 {approx = true} : vector<16x1xf32> -> vector<16x1xf32>
    %152 = vector.broadcast %151 : vector<16x1xf32> to vector<16x16xf32>
    %153 = arith.mulf %148, %152 : vector<16x16xf32>
    %154 = vector.extract_strided_slice %7 {offsets = [7, 0], sizes = [1, 16], strides = [1, 1]} : vector<8x16xf32> to vector<1x16xf32>
    %cst_54 = arith.constant dense<0.000000e+00> : vector<1x16xf32>
    %155 = tpu.matmul %154, %153, %cst_54 {dimension_numbers = #tpu.dot_dimension_numbers<[1], [1], [0], [0], [0, 0, 1, 0], [], []>} : vector<1x16xf32>, vector<16x16xf32>, vector<1x16xf32> -> vector<1x16xf32>
    %156 = arith.addf %138, %155 : vector<1x16xf32>
    %c0_55 = arith.constant 0 : index
    %c0_56 = arith.constant 0 : index
    %c0_57 = arith.constant 0 : index
    %157 = vector.load %arg6[%c0_55, %c0_56, %c0_57] : memref<1x1x16xf32, #tpu.memory_space<vmem>>, vector<1x1x16xf32>
    %158 = vector.shape_cast %157 : vector<1x1x16xf32> to vector<1x16xf32>
    %159 = vector.shape_cast %156 : vector<1x16xf32> to vector<1x1x16xf32>
    tpu.vector_store %arg6[%c0_55, %c0_56, %c0_57], %159 {strides = array<i32>} : memref<1x1x16xf32, #tpu.memory_space<vmem>>, vector<1x1x16xf32>,
    return
  }
  func.func @transform_0(%arg0: i32) -> (i32, i32, i32) {
    %c0_i32 = arith.constant 0 : i32
    %c0_i32_0 = arith.constant 0 : i32
    %c0_i32_1 = arith.constant 0 : i32
    return %arg0, %c0_i32, %c0_i32_0 : i32, i32, i32
  }
  func.func @transform_1(%arg0: i32) -> (i32, i32) {
    %c0_i32 = arith.constant 0 : i32
    %c0_i32_0 = arith.constant 0 : i32
    %c0_i32_1 = arith.constant 0 : i32
    return %c0_i32, %c0_i32_0 : i32, i32
  }
  func.func @transform_2(%arg0: i32) -> (i32, i32) {
    %c0_i32 = arith.constant 0 : i32
    %c0_i32_0 = arith.constant 0 : i32
    %c0_i32_1 = arith.constant 0 : i32
    return %c0_i32, %c0_i32_0 : i32, i32
  }
  func.func @transform_3(%arg0: i32) -> (i32, i32) {
    %c0_i32 = arith.constant 0 : i32
    %c0_i32_0 = arith.constant 0 : i32
    %c0_i32_1 = arith.constant 0 : i32
    return %c0_i32, %c0_i32_0 : i32, i32
  }
  func.func @transform_4(%arg0: i32) -> (i32, i32, i32) {
    %c0_i32 = arith.constant 0 : i32
    %c0_i32_0 = arith.constant 0 : i32
    %c0_i32_1 = arith.constant 0 : i32
    return %arg0, %c0_i32, %c0_i32_0 : i32, i32, i32
  }
  func.func @transform_5(%arg0: i32) -> (i32, i32, i32) {
    %c0_i32 = arith.constant 0 : i32
    %c0_i32_0 = arith.constant 0 : i32
    %c0_i32_1 = arith.constant 0 : i32
    return %arg0, %c0_i32, %c0_i32_0 : i32, i32, i32
  }
}

</mosaic_0001>

<llo_original>
// kernel: tpu_custom_call.1
$region0: #{tpu_custom_call.1}
  #allocation0 [shape = 'u32[]', space=smem, size = 0x4, offset = 0x4, fixed_abs, tag = 'smem constant byte address 0x4 - core index']
  #allocation1 [shape = 'u32[144,128]{1,0:T(1,128)}', space=vmem, size = 0x12000, scoped, tag = 'internal scratch']
  %s0 = inlined_call_operand.hbm [shape: f32[2,16,32], index: 0, kind: input, shape index: {}]
  %s1 = inlined_call_operand.hbm [shape: f32[32,64], index: 1, kind: input, shape index: {}]
  %s2 = inlined_call_operand.hbm [shape: f32[32,64], index: 2, kind: input, shape index: {}]
  %s3 = inlined_call_operand.vmem [shape: f32[8,32], index: 3, kind: input, shape index: {}]
  %s4 = inlined_call_operand.hbm [shape: f32[2,1,16], index: 4, kind: output, shape index: {0}]
  %s5 = inlined_call_operand.hbm [shape: f32[2,1,16], index: 5, kind: output, shape index: {1}]
  %6 = xla_tuple %s4, %s5
  %s7 = sld [smem:[#allocation0]]
  $region69: #{tpu_custom_call.1} parent=0
    _
  %s9 = ssub.s32 1, %s7
  %s10 = scalar_select 0, %s9, %s7
  $region1: #{tpu_custom_call.1} parent=0
    #allocation2 [shape = 'u8[16384]{0}', space=vmem, size = 0x4000, scoped, tag = 'input window, operand 0']
    #allocation3 [shape = 's32[2]{0}', space=sflag, size = 0x8, scoped, tag = 'scoped memory for tpu_custom_call.1']
    #allocation4 [shape = 's32[2]{0}', space=sflag, size = 0x8, scoped, tag = 'scoped memory for tpu_custom_call.1']
    #allocation5 [shape = 'u8[16384]{0}', space=vmem, size = 0x4000, scoped, tag = 'input window, operand 1, single buffered']
    #allocation6 [shape = 's32[1]{0}', space=sflag, size = 0x4, scoped, tag = 'scoped memory for tpu_custom_call.1']
    #allocation7 [shape = 'u8[16384]{0}', space=vmem, size = 0x4000, scoped, tag = 'input window, operand 2, single buffered']
    #allocation8 [shape = 'u8[1024]{0}', space=vmem, size = 0x400, scoped, tag = 'output window, operand 0']
    #allocation9 [shape = 'u8[1024]{0}', space=vmem, size = 0x400, scoped, tag = 'output window, operand 1']
    #allocation10 [shape = 's32[2]{0}', space=sflag, size = 0x8, scoped, tag = 'scoped memory for tpu_custom_call.1']
    %11 = vsyncpa [#allocation3], 0
    %s12 = scalar_lea.sflag [#allocation3], 1
    %13 = vsyncpa %s12, 0
    %14 = vsyncpa [#allocation6], 0
    %15 = vsyncpa [#allocation4], 0
    %s16 = scalar_lea.sflag [#allocation4], 1
    %17 = vsyncpa %s16, 0
    %18 = vsyncpa [#allocation10], 0
    %s19 = scalar_lea.sflag [#allocation10], 1
    %20 = vsyncpa %s19, 0
    loop: start=0, step=1, limit=4
    $region2: #{tpu_custom_call.1} parent=1 // loop_pre_header
      _
    $region3: #{tpu_custom_call.1} parent=1 // loop_header
      %s22 = sphi 0, %s26
      %p23 = scmp.ge.s32.totalorder %s22, 4
      %s32 = sphi 0, %s34
      %s35 = sphi 0, %s32
      %s36 = sphi 0, %s35
      %s52 = sphi 0, %s36
      %s56 = sphi 0, %s56
      %s58 = sphi 0, %s56
      %s59 = sphi 0, %s58
      %s73 = sphi 0, %s59
      %s77 = sphi 0, %s77
      %s79 = sphi 0, %s77
      %s80 = sphi 0, %s79
      %s94 = sphi 0, %s80
      %s98 = sphi 0, %s98
      %s100 = sphi 0, %s98
      %s101 = sphi 0, %s100
      %s115 = sphi 0, %s101
      %s121 = sphi 0, %s123
      %s124 = sphi 0, %s121
      %s125 = sphi 0, %s124
      %s141 = sphi 0, %s125
      %s147 = sphi 0, %s149
      %s150 = sphi 0, %s147
      %s151 = sphi 0, %s150
      %s167 = sphi 0, %s151
    $region4: #{tpu_custom_call.1} parent=1 // loop_header_branch
      %25 = sbr.rel (%p23) target = $region8
    $region5: #{tpu_custom_call.1} parent=1 // loop_body
      %s27 = ssub.s32 %s22, 1
      %s28 = ssub.s32 %s22, 2
      %s29 = sadd.s32 %s22, 1
      %s30 = ssub.s32 %s22, %s29
      %p31 = scmp.eq.s32.totalorder %s30, 0
      %s33 = sadd.s32 %s32, 1
      %s34 = scalar_select %p31, %s32, %s33
      %p37 = pneg %p31
      %p38 = scmp.eq.s32.totalorder %s22, 1
      %p39 = por %p37, %p38
      %p40 = scmp.ne.s32.totalorder %s32, %s35
      %p41 = scmp.eq.s32.totalorder %s22, 0
      %p42 = por %p40, %p41
      %p43 = scmp.ne.s32.totalorder %s32, %s35
      %p44 = scmp.eq.s32.totalorder %s27, 1
      %p45 = por %p43, %p44
      %p46 = scmp.ne.s32.totalorder %s35, %s36
      %p47 = scmp.eq.s32.totalorder %s27, 0
      %p48 = por %p46, %p47
      %p49 = scmp.ne.s32.totalorder %s35, %s36
      %p50 = scmp.eq.s32.totalorder %s28, 1
      %p51 = por %p49, %p50
      %p53 = scmp.ne.s32.totalorder %s36, %s52
      %p54 = scmp.eq.s32.totalorder %s28, 0
      %p55 = por %p53, %p54
      %s57 = sadd.s32 %s56, 1
      %p60 = scmp.eq.s32.totalorder %s22, 1
      %p61 = scmp.ne.s32.totalorder %s56, %s58
      %p62 = scmp.eq.s32.totalorder %s22, 0
      %p63 = por %p61, %p62
      %p64 = scmp.ne.s32.totalorder %s56, %s58
      %p65 = scmp.eq.s32.totalorder %s27, 1
      %p66 = por %p64, %p65
      %p67 = scmp.ne.s32.totalorder %s58, %s59
      %p68 = scmp.eq.s32.totalorder %s27, 0
      %p69 = por %p67, %p68
      %p70 = scmp.ne.s32.totalorder %s58, %s59
      %p71 = scmp.eq.s32.totalorder %s28, 1
      %p72 = por %p70, %p71
      %p74 = scmp.ne.s32.totalorder %s59, %s73
      %p75 = scmp.eq.s32.totalorder %s28, 0
      %p76 = por %p74, %p75
      %s78 = sadd.s32 %s77, 1
      %p81 = scmp.eq.s32.totalorder %s22, 1
      %p82 = scmp.ne.s32.totalorder %s77, %s79
      %p83 = scmp.eq.s32.totalorder %s22, 0
      %p84 = por %p82, %p83
      %p85 = scmp.ne.s32.totalorder %s77, %s79
      %p86 = scmp.eq.s32.totalorder %s27, 1
      %p87 = por %p85, %p86
      %p88 = scmp.ne.s32.totalorder %s79, %s80
      %p89 = scmp.eq.s32.totalorder %s27, 0
      %p90 = por %p88, %p89
      %p91 = scmp.ne.s32.totalorder %s79, %s80
      %p92 = scmp.eq.s32.totalorder %s28, 1
      %p93 = por %p91, %p92
      %p95 = scmp.ne.s32.totalorder %s80, %s94
      %p96 = scmp.eq.s32.totalorder %s28, 0
      %p97 = por %p95, %p96
      %s99 = sadd.s32 %s98, 1
      %p102 = scmp.eq.s32.totalorder %s22, 1
      %p103 = scmp.ne.s32.totalorder %s98, %s100
      %p104 = scmp.eq.s32.totalorder %s22, 0
      %p105 = por %p103, %p104
      %p106 = scmp.ne.s32.totalorder %s98, %s100
      %p107 = scmp.eq.s32.totalorder %s27, 1
      %p108 = por %p106, %p107
      %p109 = scmp.ne.s32.totalorder %s100, %s101
      %p110 = scmp.eq.s32.totalorder %s27, 0
      %p111 = por %p109, %p110
      %p112 = scmp.ne.s32.totalorder %s100, %s101
      %p113 = scmp.eq.s32.totalorder %s28, 1
      %p114 = por %p112, %p113
      %p116 = scmp.ne.s32.totalorder %s101, %s115
      %p117 = scmp.eq.s32.totalorder %s28, 0
      %p118 = por %p116, %p117
      %s119 = ssub.s32 %s22, %s29
      %p120 = scmp.eq.s32.totalorder %s119, 0
      %s122 = sadd.s32 %s121, 1
      %s123 = scalar_select %p120, %s121, %s122
      %p126 = pneg %p120
      %p127 = scmp.eq.s32.totalorder %s22, 1
      %p128 = por %p126, %p127
      %p129 = scmp.ne.s32.totalorder %s121, %s124
      %p130 = scmp.eq.s32.totalorder %s22, 0
      %p131 = por %p129, %p130
      %p132 = scmp.ne.s32.totalorder %s121, %s124
      %p133 = scmp.eq.s32.totalorder %s27, 1
      %p134 = por %p132, %p133
      %p135 = scmp.ne.s32.totalorder %s124, %s125
      %p136 = scmp.eq.s32.totalorder %s27, 0
      %p137 = por %p135, %p136
      %p138 = scmp.ne.s32.totalorder %s124, %s125
      %p139 = scmp.eq.s32.totalorder %s28, 1
      %p140 = por %p138, %p139
      %p142 = scmp.ne.s32.totalorder %s125, %s141
      %p143 = scmp.eq.s32.totalorder %s28, 0
      %p144 = por %p142, %p143
      %s145 = ssub.s32 %s22, %s29
      %p146 = scmp.eq.s32.totalorder %s145, 0
      %s148 = sadd.s32 %s147, 1
      %s149 = scalar_select %p146, %s147, %s148
      %p152 = pneg %p146
      %p153 = scmp.eq.s32.totalorder %s22, 1
      %p154 = por %p152, %p153
      %p155 = scmp.ne.s32.totalorder %s147, %s150
      %p156 = scmp.eq.s32.totalorder %s22, 0
      %p157 = por %p155, %p156
      %p158 = scmp.ne.s32.totalorder %s147, %s150
      %p159 = scmp.eq.s32.totalorder %s27, 1
      %p160 = por %p158, %p159
      %p161 = scmp.ne.s32.totalorder %s150, %s151
      %p162 = scmp.eq.s32.totalorder %s27, 0
      %p163 = por %p161, %p162
      %p164 = scmp.ne.s32.totalorder %s150, %s151
      %p165 = scmp.eq.s32.totalorder %s28, 1
      %p166 = por %p164, %p165
      %p168 = scmp.ne.s32.totalorder %s151, %s167
      %p169 = scmp.eq.s32.totalorder %s28, 0
      %p170 = por %p168, %p169
      %p171 = scmp.le.s32.totalorder 1, %s22
      %p172 = scmp.lt.s32.totalorder %s22, 3
      %p173 = pnand %p171, %p172
      %p174 = pneg %p173
      // Predicated region
      $region9: #{tpu_custom_call.1} parent=5 // pred_check
        _
      $region10: #{tpu_custom_call.1} parent=5 // pred_check_branch
        %176 = sbr.rel (%p173) target = $region12
      $region11: #{tpu_custom_call.1} parent=5 // pred_region
        %s177 = ssub.s32 %s22, 1
        // Predicated region
        $region13: #{tpu_custom_call.1} parent=11 // pred_check
          %p178 = pneg %p69
        $region14: #{tpu_custom_call.1} parent=11 // pred_check_branch
          %180 = sbr.rel (%p178) target = $region16
        $region15: #{tpu_custom_call.1} parent=11 // pred_region
          %s182 = ssub.s32 512, 512
          %183 = vsyncadd [#allocation6], %s182
          %s184 = sshll.u32 [#allocation5], 4
          %s185 = int_to_ptr.vmem [resolvable:$true] %s184
          %190 = dma.hbm_to_vmem [thread:$0]  %s1, 512, %s185, [#allocation6], 128, 128, 8
        $region16: #{tpu_custom_call.1} parent=11 // pred_fallthru
          _
        // Predicated region
        $region17: #{tpu_custom_call.1} parent=11 // pred_check
          %p191 = pneg %p90
        $region18: #{tpu_custom_call.1} parent=11 // pred_check_branch
          %193 = sbr.rel (%p191) target = $region20
        $region19: #{tpu_custom_call.1} parent=11 // pred_region
          %s195 = ssub.s32 512, 512
          %196 = vsyncadd [#allocation6], %s195
          %s197 = sshll.u32 [#allocation7], 4
          %s198 = int_to_ptr.vmem [resolvable:$true] %s197
          %203 = dma.hbm_to_vmem [thread:$0]  %s2, 512, %s198, [#allocation6], 128, 128, 8
        $region20: #{tpu_custom_call.1} parent=11 // pred_fallthru
          _
        // Predicated region
        $region21: #{tpu_custom_call.1} parent=11 // pred_check
          %p204 = pneg %p111
        $region22: #{tpu_custom_call.1} parent=11 // pred_check_branch
          %206 = sbr.rel (%p204) target = $region24
        $region23: #{tpu_custom_call.1} parent=11 // pred_region
          _
        $region24: #{tpu_custom_call.1} parent=11 // pred_fallthru
          _
      $region12: #{tpu_custom_call.1} parent=5 // pred_fallthru
        _
      %p207 = scmp.lt.s32.totalorder %s22, 2
      // Predicated region
      $region25: #{tpu_custom_call.1} parent=5 // pred_check
        %p208 = pneg %p207
      $region26: #{tpu_custom_call.1} parent=5 // pred_check_branch
        %210 = sbr.rel (%p208) target = $region28
      $region27: #{tpu_custom_call.1} parent=5 // pred_region
        // Predicated region
        $region29: #{tpu_custom_call.1} parent=27 // pred_check
          %p211 = pneg %p42
        $region30: #{tpu_custom_call.1} parent=27 // pred_check_branch
          %213 = sbr.rel (%p211) target = $region32
        $region31: #{tpu_custom_call.1} parent=27 // pred_region
          %s214 = sand.u32 %s32, 1
          %s215 = scalar_lea.sflag [#allocation3], %s214
          %s216 = sand.u32 %s32, 1
          %s217 = smul.addr %s216, 16
          %s218 = scalar_lea.vmem [#allocation2], %s217
          %s220 = ssub.s32 256, 256
          %221 = vsyncadd %s215, %s220
          %s222 = smul.addr %s22, 2
          %s223 = smul.addr %s222, 128
          %s224 = scalar_lea.hbm %s0, %s223
          %s225 = sshll.u32 %s218, 4
          %s226 = int_to_ptr.vmem [resolvable:$true] %s225
          %231 = dma.hbm_to_vmem [thread:$0]  %s224, 256, %s226, %s215, 128, 128, 8
        $region32: #{tpu_custom_call.1} parent=27 // pred_fallthru
          _
      $region28: #{tpu_custom_call.1} parent=5 // pred_fallthru
        _
      %p232 = scmp.le.s32.totalorder 1, %s22
      %p233 = scmp.lt.s32.totalorder %s22, 3
      %p234 = pnand %p232, %p233
      %p235 = pneg %p234
      // Predicated region
      $region33: #{tpu_custom_call.1} parent=5 // pred_check
        _
      $region34: #{tpu_custom_call.1} parent=5 // pred_check_branch
        %237 = sbr.rel (%p234) target = $region36
      $region35: #{tpu_custom_call.1} parent=5 // pred_region
        %s238 = ssub.s32 %s22, 1
        %s239 = sand.u32 %s35, 1
        %s240 = scalar_lea.sflag [#allocation3], %s239
        %s241 = sand.u32 %s35, 1
        %s242 = smul.addr %s241, 16
        %s243 = scalar_lea.vmem [#allocation2], %s242
        // Predicated region
        $region37: #{tpu_custom_call.1} parent=35 // pred_check
          %p244 = pneg %p48
        $region38: #{tpu_custom_call.1} parent=35 // pred_check_branch
          %246 = sbr.rel (%p244) target = $region40
        $region39: #{tpu_custom_call.1} parent=35 // pred_region
          %247 = dma.done %s240, 256
        $region40: #{tpu_custom_call.1} parent=35 // pred_fallthru
          _
        // Predicated region
        $region41: #{tpu_custom_call.1} parent=35 // pred_check
          %p248 = pneg %p69
        $region42: #{tpu_custom_call.1} parent=35 // pred_check_branch
          %250 = sbr.rel (%p248) target = $region44
        $region43: #{tpu_custom_call.1} parent=35 // pred_region
          %251 = dma.done [#allocation6], 512
        $region44: #{tpu_custom_call.1} parent=35 // pred_fallthru
          _
        // Predicated region
        $region45: #{tpu_custom_call.1} parent=35 // pred_check
          %p252 = pneg %p90
        $region46: #{tpu_custom_call.1} parent=35 // pred_check_branch
          %254 = sbr.rel (%p252) target = $region48
        $region47: #{tpu_custom_call.1} parent=35 // pred_region
          %255 = dma.done [#allocation6], 512
        $region48: #{tpu_custom_call.1} parent=35 // pred_fallthru
          _
        %s256 = sand.u32 %s35, 1
        %s257 = scalar_lea.sflag [#allocation3], %s256
        %s258 = sand.u32 %s35, 1
        %s259 = smul.addr %s258, 16
        %s260 = scalar_lea.vmem [#allocation2], %s259
        %p261 = pneg %p48
        %p262 = pneg %p45
        %p263 = pneg %p69
        %p264 = pneg %p66
        %p265 = pneg %p90
        %p266 = pneg %p87
        %p267 = pneg %p111
        %p268 = pneg %p108
        %p269 = pneg %p137
        %p270 = pneg %p134
        %s271 = sand.u32 %s124, 1
        %s272 = scalar_lea.sflag [#allocation4], %s271
        %s273 = sand.u32 %s124, 1
        %s274 = scalar_lea.vmem [#allocation8], %s273
        %p275 = pneg %p163
        %p276 = pneg %p160
        %s277 = sand.u32 %s150, 1
        %s278 = scalar_lea.sflag [#allocation10], %s277
        %s279 = sand.u32 %s150, 1
        %s280 = scalar_lea.vmem [#allocation9], %s279
        %v281 = vld [vmem:[%s243] sm:$0xff]
        %v282 = vld [vmem:[%s243 + $0x8] sm:$0xff]
        %v283 = vld [vmem:[#allocation5] sm:$0xff]
        %v284 = vld [vmem:[#allocation5 + $0x8] sm:$0xff]
        %v285 = vld [vmem:[#allocation5 + $0x10] sm:$0xff]
        %v286 = vld [vmem:[#allocation5 + $0x18] sm:$0xff]
        %vm287 = vcmask 261120
        %v289 = vsel %vm287, %v281, 0
        %v292 = vsel %vm287, %v282, 0
        %294 = vmatprep.subr.mxu0 0.0
        %295 = vmatpush1.msra.mxu0 %v283
        %296 = vmatprep.subr.mxu0 0.0
        %297 = vmatpush1.msra.mxu0 %v284
        %298 = vmatprep.subr.mxu0 0.0
        %299 = vmatpush1.msra.mxu0 %v285
        %300 = vmatprep.subr.mxu0 0.0
        %301 = vmatpush1.msra.mxu0 %v286
        %302 = vmatprep.subr.mxu0 0.0
        %303 = vmatpush1.msra.mxu0 0.0
        %304 = vmatprep.subr.mxu0 0.0
        %305 = vmatpush1.msra.mxu0 0.0
        %306 = vmatprep.subr.mxu0 0.0
        %307 = vmatpush1.msra.mxu0 0.0
        %308 = vmatprep.subr.mxu0 0.0
        %309 = vmatpush1.msra.mxu0 0.0
        %310 = vmatprep.subr.mxu0 0.0
        %311 = vmatpush1.msra.mxu0 0.0
        %312 = vmatprep.subr.mxu0 0.0
        %313 = vmatpush1.msra.mxu0 0.0
        %314 = vmatprep.subr.mxu0 0.0
        %315 = vmatpush1.msra.mxu0 0.0
        %316 = vmatprep.subr.mxu0 0.0
        %317 = vmatpush1.msra.mxu0 0.0
        %318 = vmatprep.subr.mxu0 0.0
        %319 = vmatpush1.msra.mxu0 0.0
        %320 = vmatprep.subr.mxu0 0.0
        %321 = vmatpush1.msra.mxu0 0.0
        %322 = vmatprep.subr.mxu0 0.0
        %323 = vmatpush1.msra.mxu0 0.0
        %324 = vmatprep.subr.mxu0 0.0
        %325 = vmatpush1.msra.mxu0 0.0
        %326 = vmatprep.subr.mxu0 0.0
        %327 = vmatpush1.msra.mxu0 0.0
        %328 = vmatprep.subr.mxu0 0.0
        %329 = vmatpush1.msra.mxu0 0.0
        %330 = vmatprep.subr.mxu0 0.0
        %331 = vmatpush1.msra.mxu0 0.0
        %332 = vmatprep.subr.mxu0 0.0
        %333 = vmatpush1.msra.mxu0 0.0
        %334 = vmatprep.subr.mxu0 0.0
        %335 = vmatpush1.msra.mxu0 0.0
        %336 = vmatprep.subr.mxu0 0.0
        %337 = vmatpush1.msra.mxu0 0.0
        %338 = vmatprep.subr.mxu0 0.0
        %339 = vmatpush1.msra.mxu0 0.0
        %340 = vmatprep.subr.mxu0 0.0
        %341 = vmatpush1.msra.mxu0 0.0
        %342 = vmatprep.subr.mxu0 0.0
        %343 = vmatpush1.msra.mxu0 0.0
        %344 = vmatprep.subr.mxu0 0.0
        %345 = vmatpush1.msra.mxu0 0.0
        %346 = vmatprep.subr.mxu0 0.0
        %347 = vmatpush1.msra.mxu0 0.0
        %348 = vmatprep.subr.mxu0 0.0
        %349 = vmatpush1.msra.mxu0 0.0
        %350 = vmatprep.subr.mxu0 0.0
        %351 = vmatpush1.msra.mxu0 0.0
        %352 = vmatprep.subr.mxu0 0.0
        %353 = vmatpush1.msra.mxu0 0.0
        %354 = vmatprep.subr.mxu0 0.0
        %355 = vmatpush1.msra.mxu0 0.0
        %356 = vmatprep.subr.mxu0 0.0
        %357 = vmatpush1.msra.mxu0 0.0
        %358 = vmatprep.mubr.f32.mxu0 0.0
        %359 = vmatmul.mubr.f32.gmra.mrb[0].mxu0 %v289
        %v360 = vpop.f32.mrb[0].mxu0
        %v361 = vadd.f32 0.0, %v360
        %v362 = vpop.f32.mrb[0].mxu0
        %363 = vmatprep.mubr.f32.mxu0 0.0
        %364 = vmatmul.mubr.f32.gmra.mrb[0].mxu0 %v292
        %v365 = vpop.f32.mrb[0].mxu0
        %v366 = vadd.f32 0.0, %v365
        %v367 = vpop.f32.mrb[0].mxu0
        %368 = vdwg.mxu0
        %v369 = vld [vmem:[#allocation7] sm:$0xff]
        %v370 = vld [vmem:[#allocation7 + $0x8] sm:$0xff]
        %v371 = vld [vmem:[#allocation7 + $0x10] sm:$0xff]
        %v372 = vld [vmem:[#allocation7 + $0x18] sm:$0xff]
        %373 = vmatprep.subr.mxu0 0.0
        %374 = vmatpush1.msra.mxu0 %v369
        %375 = vmatprep.subr.mxu0 0.0
        %376 = vmatpush1.msra.mxu0 %v370
        %377 = vmatprep.subr.mxu0 0.0
        %378 = vmatpush1.msra.mxu0 %v371
        %379 = vmatprep.subr.mxu0 0.0
        %380 = vmatpush1.msra.mxu0 %v372
        %381 = vmatprep.subr.mxu0 0.0
        %382 = vmatpush1.msra.mxu0 0.0
        %383 = vmatprep.subr.mxu0 0.0
        %384 = vmatpush1.msra.mxu0 0.0
        %385 = vmatprep.subr.mxu0 0.0
        %386 = vmatpush1.msra.mxu0 0.0
        %387 = vmatprep.subr.mxu0 0.0
        %388 = vmatpush1.msra.mxu0 0.0
        %389 = vmatprep.subr.mxu0 0.0
        %390 = vmatpush1.msra.mxu0 0.0
        %391 = vmatprep.subr.mxu0 0.0
        %392 = vmatpush1.msra.mxu0 0.0
        %393 = vmatprep.subr.mxu0 0.0
        %394 = vmatpush1.msra.mxu0 0.0
        %395 = vmatprep.subr.mxu0 0.0
        %396 = vmatpush1.msra.mxu0 0.0
        %397 = vmatprep.subr.mxu0 0.0
        %398 = vmatpush1.msra.mxu0 0.0
        %399 = vmatprep.subr.mxu0 0.0
        %400 = vmatpush1.msra.mxu0 0.0
        %401 = vmatprep.subr.mxu0 0.0
        %402 = vmatpush1.msra.mxu0 0.0
        %403 = vmatprep.subr.mxu0 0.0
        %404 = vmatpush1.msra.mxu0 0.0
        %405 = vmatprep.subr.mxu0 0.0
        %406 = vmatpush1.msra.mxu0 0.0
        %407 = vmatprep.subr.mxu0 0.0
        %408 = vmatpush1.msra.mxu0 0.0
        %409 = vmatprep.subr.mxu0 0.0
        %410 = vmatpush1.msra.mxu0 0.0
        %411 = vmatprep.subr.mxu0 0.0
        %412 = vmatpush1.msra.mxu0 0.0
        %413 = vmatprep.subr.mxu0 0.0
        %414 = vmatpush1.msra.mxu0 0.0
        %415 = vmatprep.subr.mxu0 0.0
        %416 = vmatpush1.msra.mxu0 0.0
        %417 = vmatprep.subr.mxu0 0.0
        %418 = vmatpush1.msra.mxu0 0.0
        %419 = vmatprep.subr.mxu0 0.0
        %420 = vmatpush1.msra.mxu0 0.0
        %421 = vmatprep.subr.mxu0 0.0
        %422 = vmatpush1.msra.mxu0 0.0
        %423 = vmatprep.subr.mxu0 0.0
        %424 = vmatpush1.msra.mxu0 0.0
        %425 = vmatprep.subr.mxu0 0.0
        %426 = vmatpush1.msra.mxu0 0.0
        %427 = vmatprep.subr.mxu0 0.0
        %428 = vmatpush1.msra.mxu0 0.0
        %429 = vmatprep.subr.mxu0 0.0
        %430 = vmatpush1.msra.mxu0 0.0
        %431 = vmatprep.subr.mxu0 0.0
        %432 = vmatpush1.msra.mxu0 0.0
        %433 = vmatprep.subr.mxu0 0.0
        %434 = vmatpush1.msra.mxu0 0.0
        %435 = vmatprep.subr.mxu0 0.0
        %436 = vmatpush1.msra.mxu0 0.0
        %437 = vmatprep.mubr.f32.mxu0 0.0
        %438 = vmatmul.mubr.f32.gmra.mrb[0].mxu0 %v289
        %v439 = vpop.f32.mrb[0].mxu0
        %v440 = vadd.f32 0.0, %v439
        %v441 = vpop.f32.mrb[0].mxu0
        %442 = vmatprep.mubr.f32.mxu0 0.0
        %443 = vmatmul.mubr.f32.gmra.mrb[0].mxu0 %v292
        %v444 = vpop.f32.mrb[0].mxu0
        %v445 = vadd.f32 0.0, %v444
        %v446 = vpop.f32.mrb[0].mxu0
        %447 = vdwg.mxu0
        %v448 = vld [vmem:[%s3] sm:$0xff]
        %v450 = vsel %vm287, %v448, 0
        %452 = vmatprep.subr.mxu0 0.0
        %453 = vmatpush1.xpose.msra.mxu0 %v289
        %454 = vmatprep.subr.mxu0 0.0
        %455 = vmatpush1.xpose.msra.mxu0 %v292
        %456 = vmatprep.subr.mxu0 0.0
        %457 = vmatpush1.xpose.msra.mxu0 0.0
        %458 = vmatprep.subr.mxu0 0.0
        %459 = vmatpush1.xpose.msra.mxu0 0.0
        %460 = vmatprep.subr.mxu0 0.0
        %461 = vmatpush1.xpose.msra.mxu0 0.0
        %462 = vmatprep.subr.mxu0 0.0
        %463 = vmatpush1.xpose.msra.mxu0 0.0
        %464 = vmatprep.subr.mxu0 0.0
        %465 = vmatpush1.xpose.msra.mxu0 0.0
        %466 = vmatprep.subr.mxu0 0.0
        %467 = vmatpush1.xpose.msra.mxu0 0.0
        %468 = vmatprep.subr.mxu0 0.0
        %469 = vmatpush1.xpose.msra.mxu0 0.0
        %470 = vmatprep.subr.mxu0 0.0
        %471 = vmatpush1.xpose.msra.mxu0 0.0
        %472 = vmatprep.subr.mxu0 0.0
        %473 = vmatpush1.xpose.msra.mxu0 0.0
        %474 = vmatprep.subr.mxu0 0.0
        %475 = vmatpush1.xpose.msra.mxu0 0.0
        %476 = vmatprep.subr.mxu0 0.0
        %477 = vmatpush1.xpose.msra.mxu0 0.0
        %478 = vmatprep.subr.mxu0 0.0
        %479 = vmatpush1.xpose.msra.mxu0 0.0
        %480 = vmatprep.subr.mxu0 0.0
        %481 = vmatpush1.xpose.msra.mxu0 0.0
        %482 = vmatprep.subr.mxu0 0.0
        %483 = vmatpush1.xpose.msra.mxu0 0.0
        %484 = vmatprep.subr.mxu0 0.0
        %485 = vmatpush1.xpose.msra.mxu0 0.0
        %486 = vmatprep.subr.mxu0 0.0
        %487 = vmatpush1.xpose.msra.mxu0 0.0
        %488 = vmatprep.subr.mxu0 0.0
        %489 = vmatpush1.xpose.msra.mxu0 0.0
        %490 = vmatprep.subr.mxu0 0.0
        %491 = vmatpush1.xpose.msra.mxu0 0.0
        %492 = vmatprep.subr.mxu0 0.0
        %493 = vmatpush1.xpose.msra.mxu0 0.0
        %494 = vmatprep.subr.mxu0 0.0
        %495 = vmatpush1.xpose.msra.mxu0 0.0
        %496 = vmatprep.subr.mxu0 0.0
        %497 = vmatpush1.xpose.msra.mxu0 0.0
        %498 = vmatprep.subr.mxu0 0.0
        %499 = vmatpush1.xpose.msra.mxu0 0.0
        %500 = vmatprep.subr.mxu0 0.0
        %501 = vmatpush1.xpose.msra.mxu0 0.0
        %502 = vmatprep.subr.mxu0 0.0
        %503 = vmatpush1.xpose.msra.mxu0 0.0
        %504 = vmatprep.subr.mxu0 0.0
        %505 = vmatpush1.xpose.msra.mxu0 0.0
        %506 = vmatprep.subr.mxu0 0.0
        %507 = vmatpush1.xpose.msra.mxu0 0.0
        %508 = vmatprep.subr.mxu0 0.0
        %509 = vmatpush1.xpose.msra.mxu0 0.0
        %510 = vmatprep.subr.mxu0 0.0
        %511 = vmatpush1.xpose.msra.mxu0 0.0
        %512 = vmatprep.subr.mxu0 0.0
        %513 = vmatpush1.xpose.msra.mxu0 0.0
        %514 = vmatprep.subr.mxu0 0.0
        %515 = vmatpush1.xpose.msra.mxu0 0.0
        %516 = vmatprep.mubr.f32.mxu0 0.0
        %517 = vmatmul.mubr.f32.gmra.mrb[0].mxu0 %v450
        %v518 = vpop.f32.mrb[0].mxu0
        %v519 = vadd.f32 0.0, %v518
        %v520 = vpop.f32.mrb[0].mxu0
        %521 = vdwg.mxu0
        %vm522 = vcmask 64512
        %v524 = vsel %vm522, %v361, 0
        %v527 = vsel %vm522, %v366, 0
        %v530 = vsel %vm522, %v440, 0
        %v533 = vsel %vm522, %v445, 0
        %535 = vmatprep.subr.mxu0 0.0
        %536 = vmatpush1.xpose.msra.mxu0 %v530
        %537 = vmatprep.subr.mxu0 0.0
        %538 = vmatpush1.xpose.msra.mxu0 %v533
        %539 = vmatprep.subr.mxu0 0.0
        %540 = vmatpush1.xpose.msra.mxu0 0.0
        %541 = vmatprep.subr.mxu0 0.0
        %542 = vmatpush1.xpose.msra.mxu0 0.0
        %543 = vmatprep.subr.mxu0 0.0
        %544 = vmatpush1.xpose.msra.mxu0 0.0
        %545 = vmatprep.subr.mxu0 0.0
        %546 = vmatpush1.xpose.msra.mxu0 0.0
        %547 = vmatprep.subr.mxu0 0.0
        %548 = vmatpush1.xpose.msra.mxu0 0.0
        %549 = vmatprep.subr.mxu0 0.0
        %550 = vmatpush1.xpose.msra.mxu0 0.0
        %551 = vmatprep.subr.mxu0 0.0
        %552 = vmatpush1.xpose.msra.mxu0 0.0
        %553 = vmatprep.subr.mxu0 0.0
        %554 = vmatpush1.xpose.msra.mxu0 0.0
        %555 = vmatprep.subr.mxu0 0.0
        %556 = vmatpush1.xpose.msra.mxu0 0.0
        %557 = vmatprep.subr.mxu0 0.0
        %558 = vmatpush1.xpose.msra.mxu0 0.0
        %559 = vmatprep.subr.mxu0 0.0
        %560 = vmatpush1.xpose.msra.mxu0 0.0
        %561 = vmatprep.subr.mxu0 0.0
        %562 = vmatpush1.xpose.msra.mxu0 0.0
        %563 = vmatprep.subr.mxu0 0.0
        %564 = vmatpush1.xpose.msra.mxu0 0.0
        %565 = vmatprep.subr.mxu0 0.0
        %566 = vmatpush1.xpose.msra.mxu0 0.0
        %567 = vmatprep.subr.mxu0 0.0
        %568 = vmatpush1.xpose.msra.mxu0 0.0
        %569 = vmatprep.subr.mxu0 0.0
        %570 = vmatpush1.xpose.msra.mxu0 0.0
        %571 = vmatprep.subr.mxu0 0.0
        %572 = vmatpush1.xpose.msra.mxu0 0.0
        %573 = vmatprep.subr.mxu0 0.0
        %574 = vmatpush1.xpose.msra.mxu0 0.0
        %575 = vmatprep.subr.mxu0 0.0
        %576 = vmatpush1.xpose.msra.mxu0 0.0
        %577 = vmatprep.subr.mxu0 0.0
        %578 = vmatpush1.xpose.msra.mxu0 0.0
        %579 = vmatprep.subr.mxu0 0.0
        %580 = vmatpush1.xpose.msra.mxu0 0.0
        %581 = vmatprep.subr.mxu0 0.0
        %582 = vmatpush1.xpose.msra.mxu0 0.0
        %583 = vmatprep.subr.mxu0 0.0
        %584 = vmatpush1.xpose.msra.mxu0 0.0
        %585 = vmatprep.subr.mxu0 0.0
        %586 = vmatpush1.xpose.msra.mxu0 0.0
        %587 = vmatprep.subr.mxu0 0.0
        %588 = vmatpush1.xpose.msra.mxu0 0.0
        %589 = vmatprep.subr.mxu0 0.0
        %590 = vmatpush1.xpose.msra.mxu0 0.0
        %591 = vmatprep.subr.mxu0 0.0
        %592 = vmatpush1.xpose.msra.mxu0 0.0
        %593 = vmatprep.subr.mxu0 0.0
        %594 = vmatpush1.xpose.msra.mxu0 0.0
        %595 = vmatprep.subr.mxu0 0.0
        %596 = vmatpush1.xpose.msra.mxu0 0.0
        %597 = vmatprep.subr.mxu0 0.0
        %598 = vmatpush1.xpose.msra.mxu0 0.0
        %599 = vmatprep.mubr.f32.mxu0 0.0
        %600 = vmatmul.mubr.f32.gmra.mrb[0].mxu0 %v524
        %v601 = vpop.f32.mrb[0].mxu0
        %v602 = vadd.f32 0.0, %v601
        %v603 = vpop.f32.mrb[0].mxu0
        %604 = vmatprep.mubr.f32.mxu0 0.0
        %605 = vmatmul.mubr.f32.gmra.mrb[0].mxu0 %v527
        %v606 = vpop.f32.mrb[0].mxu0
        %v607 = vadd.f32 0.0, %v606
        %v608 = vpop.f32.mrb[0].mxu0
        %609 = vdwg.mxu0
        %v610 = vmul.f32 %v602, 0.35355338
        %v611 = vmul.f32 %v607, 0.35355338
        %vm612 = vcmask 130048
        %v613 = vsel %vm612, %v610, -inf
        %614 = vmax.xlane.f32.xlu0 %v613
        %v615 = vpop.xlane.xlu0 %614
        %v616 = vsel %vm612, %v611, -inf
        %617 = vmax.xlane.f32.xlu0 %v616
        %v618 = vpop.xlane.xlu0 %617
        %v619 = vsub.f32 %v610, %v615
        %v620 = vsub.f32 %v611, %v618
        %v621 = vmul.f32 %v619, 1.442695
        %v622 = vpow.pop %v621
        %v623 = vmul.f32 %v620, 1.442695
        %v624 = vpow.pop %v623
        %v625 = vsel %vm612, %v622, 0.0
        %626 = vadd.xlane.f32.xlu0 %v625
        %v627 = vpop.xlane.xlu0 %626
        %v628 = vsel %vm612, %v624, 0.0
        %629 = vadd.xlane.f32.xlu0 %v628
        %v630 = vpop.xlane.xlu0 %629
        %v631 = vrcp.pop %v627
        %v632 = vrcp.pop %v630
        %v633 = vmul.f32 %v622, %v631
        %v634 = vmul.f32 %v624, %v632
        %635 = vrot.lane.b32.xlu0 %v361, 120
        %v636 = vpop.permute.xlu0 %635
        %637 = vrot.lane.b32.xlu0 %v366, 120
        %v638 = vpop.permute.xlu0 %637
        %639 = vrot.lane.b32.xlu0 %v440, 120
        %v640 = vpop.permute.xlu0 %639
        %641 = vrot.lane.b32.xlu0 %v445, 120
        %v642 = vpop.permute.xlu0 %641
        %v643 = vsel %vm522, %v636, 0
        %v645 = vsel %vm522, %v638, 0
        %v647 = vsel %vm522, %v640, 0
        %v649 = vsel %vm522, %v642, 0
        %651 = vmatprep.subr.mxu0 0.0
        %652 = vmatpush1.xpose.msra.mxu0 %v647
        %653 = vmatprep.subr.mxu0 0.0
        %654 = vmatpush1.xpose.msra.mxu0 %v649
        %655 = vmatprep.subr.mxu0 0.0
        %656 = vmatpush1.xpose.msra.mxu0 0.0
        %657 = vmatprep.subr.mxu0 0.0
        %658 = vmatpush1.xpose.msra.mxu0 0.0
        %659 = vmatprep.subr.mxu0 0.0
        %660 = vmatpush1.xpose.msra.mxu0 0.0
        %661 = vmatprep.subr.mxu0 0.0
        %662 = vmatpush1.xpose.msra.mxu0 0.0
        %663 = vmatprep.subr.mxu0 0.0
        %664 = vmatpush1.xpose.msra.mxu0 0.0
        %665 = vmatprep.subr.mxu0 0.0
        %666 = vmatpush1.xpose.msra.mxu0 0.0
        %667 = vmatprep.subr.mxu0 0.0
        %668 = vmatpush1.xpose.msra.mxu0 0.0
        %669 = vmatprep.subr.mxu0 0.0
        %670 = vmatpush1.xpose.msra.mxu0 0.0
        %671 = vmatprep.subr.mxu0 0.0
        %672 = vmatpush1.xpose.msra.mxu0 0.0
        %673 = vmatprep.subr.mxu0 0.0
        %674 = vmatpush1.xpose.msra.mxu0 0.0
        %675 = vmatprep.subr.mxu0 0.0
        %676 = vmatpush1.xpose.msra.mxu0 0.0
        %677 = vmatprep.subr.mxu0 0.0
        %678 = vmatpush1.xpose.msra.mxu0 0.0
        %679 = vmatprep.subr.mxu0 0.0
        %680 = vmatpush1.xpose.msra.mxu0 0.0
        %681 = vmatprep.subr.mxu0 0.0
        %682 = vmatpush1.xpose.msra.mxu0 0.0
        %683 = vmatprep.subr.mxu0 0.0
        %684 = vmatpush1.xpose.msra.mxu0 0.0
        %685 = vmatprep.subr.mxu0 0.0
        %686 = vmatpush1.xpose.msra.mxu0 0.0
        %687 = vmatprep.subr.mxu0 0.0
        %688 = vmatpush1.xpose.msra.mxu0 0.0
        %689 = vmatprep.subr.mxu0 0.0
        %690 = vmatpush1.xpose.msra.mxu0 0.0
        %691 = vmatprep.subr.mxu0 0.0
        %692 = vmatpush1.xpose.msra.mxu0 0.0
        %693 = vmatprep.subr.mxu0 0.0
        %694 = vmatpush1.xpose.msra.mxu0 0.0
        %695 = vmatprep.subr.mxu0 0.0
        %696 = vmatpush1.xpose.msra.mxu0 0.0
        %697 = vmatprep.subr.mxu0 0.0
        %698 = vmatpush1.xpose.msra.mxu0 0.0
        %699 = vmatprep.subr.mxu0 0.0
        %700 = vmatpush1.xpose.msra.mxu0 0.0
        %701 = vmatprep.subr.mxu0 0.0
        %702 = vmatpush1.xpose.msra.mxu0 0.0
        %703 = vmatprep.subr.mxu0 0.0
        %704 = vmatpush1.xpose.msra.mxu0 0.0
        %705 = vmatprep.subr.mxu0 0.0
        %706 = vmatpush1.xpose.msra.mxu0 0.0
        %707 = vmatprep.subr.mxu0 0.0
        %708 = vmatpush1.xpose.msra.mxu0 0.0
        %709 = vmatprep.subr.mxu0 0.0
        %710 = vmatpush1.xpose.msra.mxu0 0.0
        %711 = vmatprep.subr.mxu0 0.0
        %712 = vmatpush1.xpose.msra.mxu0 0.0
        %713 = vmatprep.subr.mxu0 0.0
        %714 = vmatpush1.xpose.msra.mxu0 0.0
        %715 = vmatprep.mubr.f32.mxu0 0.0
        %716 = vmatmul.mubr.f32.gmra.mrb[0].mxu0 %v643
        %v717 = vpop.f32.mrb[0].mxu0
        %v718 = vadd.f32 0.0, %v717
        %v719 = vpop.f32.mrb[0].mxu0
        %720 = vmatprep.mubr.f32.mxu0 0.0
        %721 = vmatmul.mubr.f32.gmra.mrb[0].mxu0 %v645
        %v722 = vpop.f32.mrb[0].mxu0
        %v723 = vadd.f32 0.0, %v722
        %v724 = vpop.f32.mrb[0].mxu0
        %725 = vdwg.mxu0
        %v726 = vmul.f32 %v718, 0.35355338
        %v727 = vmul.f32 %v723, 0.35355338
        %v728 = vsel %vm612, %v726, -inf
        %729 = vmax.xlane.f32.xlu0 %v728
        %v730 = vpop.xlane.xlu0 %729
        %v731 = vsel %vm612, %v727, -inf
        %732 = vmax.xlane.f32.xlu0 %v731
        %v733 = vpop.xlane.xlu0 %732
        %v734 = vsub.f32 %v726, %v730
        %v735 = vsub.f32 %v727, %v733
        %v736 = vmul.f32 %v734, 1.442695
        %v737 = vpow.pop %v736
        %v738 = vmul.f32 %v735, 1.442695
        %v739 = vpow.pop %v738
        %v740 = vsel %vm612, %v737, 0.0
        %741 = vadd.xlane.f32.xlu0 %v740
        %v742 = vpop.xlane.xlu0 %741
        %v743 = vsel %vm612, %v739, 0.0
        %744 = vadd.xlane.f32.xlu0 %v743
        %v745 = vpop.xlane.xlu0 %744
        %v746 = vrcp.pop %v742
        %v747 = vrcp.pop %v745
        %v748 = vmul.f32 %v737, %v746
        %v749 = vmul.f32 %v739, %v747
        %v751 = vrot.slane %v519, 1
        %v752 = vsel %vm612, %v751, 0
        %v755 = vsel %vm612, %v748, 0
        %v758 = vsel %vm612, %v749, 0
        %760 = vmatprep.subr.mxu0 0.0
        %761 = vmatpush1.xpose.msra.mxu0 %v755
        %762 = vmatprep.subr.mxu0 0.0
        %763 = vmatpush1.xpose.msra.mxu0 %v758
        %764 = vmatprep.subr.mxu0 0.0
        %765 = vmatpush1.xpose.msra.mxu0 0.0
        %766 = vmatprep.subr.mxu0 0.0
        %767 = vmatpush1.xpose.msra.mxu0 0.0
        %768 = vmatprep.subr.mxu0 0.0
        %769 = vmatpush1.xpose.msra.mxu0 0.0
        %770 = vmatprep.subr.mxu0 0.0
        %771 = vmatpush1.xpose.msra.mxu0 0.0
        %772 = vmatprep.subr.mxu0 0.0
        %773 = vmatpush1.xpose.msra.mxu0 0.0
        %774 = vmatprep.subr.mxu0 0.0
        %775 = vmatpush1.xpose.msra.mxu0 0.0
        %776 = vmatprep.subr.mxu0 0.0
        %777 = vmatpush1.xpose.msra.mxu0 0.0
        %778 = vmatprep.subr.mxu0 0.0
        %779 = vmatpush1.xpose.msra.mxu0 0.0
        %780 = vmatprep.subr.mxu0 0.0
        %781 = vmatpush1.xpose.msra.mxu0 0.0
        %782 = vmatprep.subr.mxu0 0.0
        %783 = vmatpush1.xpose.msra.mxu0 0.0
        %784 = vmatprep.subr.mxu0 0.0
        %785 = vmatpush1.xpose.msra.mxu0 0.0
        %786 = vmatprep.subr.mxu0 0.0
        %787 = vmatpush1.xpose.msra.mxu0 0.0
        %788 = vmatprep.subr.mxu0 0.0
        %789 = vmatpush1.xpose.msra.mxu0 0.0
        %790 = vmatprep.subr.mxu0 0.0
        %791 = vmatpush1.xpose.msra.mxu0 0.0
        %792 = vmatprep.subr.mxu0 0.0
        %793 = vmatpush1.xpose.msra.mxu0 0.0
        %794 = vmatprep.subr.mxu0 0.0
        %795 = vmatpush1.xpose.msra.mxu0 0.0
        %796 = vmatprep.subr.mxu0 0.0
        %797 = vmatpush1.xpose.msra.mxu0 0.0
        %798 = vmatprep.subr.mxu0 0.0
        %799 = vmatpush1.xpose.msra.mxu0 0.0
        %800 = vmatprep.subr.mxu0 0.0
        %801 = vmatpush1.xpose.msra.mxu0 0.0
        %802 = vmatprep.subr.mxu0 0.0
        %803 = vmatpush1.xpose.msra.mxu0 0.0
        %804 = vmatprep.subr.mxu0 0.0
        %805 = vmatpush1.xpose.msra.mxu0 0.0
        %806 = vmatprep.subr.mxu0 0.0
        %807 = vmatpush1.xpose.msra.mxu0 0.0
        %808 = vmatprep.subr.mxu0 0.0
        %809 = vmatpush1.xpose.msra.mxu0 0.0
        %810 = vmatprep.subr.mxu0 0.0
        %811 = vmatpush1.xpose.msra.mxu0 0.0
        %812 = vmatprep.subr.mxu0 0.0
        %813 = vmatpush1.xpose.msra.mxu0 0.0
        %814 = vmatprep.subr.mxu0 0.0
        %815 = vmatpush1.xpose.msra.mxu0 0.0
        %816 = vmatprep.subr.mxu0 0.0
        %817 = vmatpush1.xpose.msra.mxu0 0.0
        %818 = vmatprep.subr.mxu0 0.0
        %819 = vmatpush1.xpose.msra.mxu0 0.0
        %820 = vmatprep.subr.mxu0 0.0
        %821 = vmatpush1.xpose.msra.mxu0 0.0
        %822 = vmatprep.subr.mxu0 0.0
        %823 = vmatpush1.xpose.msra.mxu0 0.0
        %824 = vmatprep.mubr.f32.mxu0 0.0
        %825 = vmatmul.mubr.f32.gmra.mrb[0].mxu0 %v752
        %v826 = vpop.f32.mrb[0].mxu0
        %v827 = vadd.f32 0.0, %v826
        %v828 = vpop.f32.mrb[0].mxu0
        %829 = vdwg.mxu0
        %v830 = vsel %vm612, %v519, 0
        %v833 = vsel %vm612, %v633, 0
        %v836 = vsel %vm612, %v634, 0
        %838 = vmatprep.subr.mxu0 0.0
        %839 = vmatpush1.xpose.msra.mxu0 %v833
        %840 = vmatprep.subr.mxu0 0.0
        %841 = vmatpush1.xpose.msra.mxu0 %v836
        %842 = vmatprep.subr.mxu0 0.0
        %843 = vmatpush1.xpose.msra.mxu0 0.0
        %844 = vmatprep.subr.mxu0 0.0
        %845 = vmatpush1.xpose.msra.mxu0 0.0
        %846 = vmatprep.subr.mxu0 0.0
        %847 = vmatpush1.xpose.msra.mxu0 0.0
        %848 = vmatprep.subr.mxu0 0.0
        %849 = vmatpush1.xpose.msra.mxu0 0.0
        %850 = vmatprep.subr.mxu0 0.0
        %851 = vmatpush1.xpose.msra.mxu0 0.0
        %852 = vmatprep.subr.mxu0 0.0
        %853 = vmatpush1.xpose.msra.mxu0 0.0
        %854 = vmatprep.subr.mxu0 0.0
        %855 = vmatpush1.xpose.msra.mxu0 0.0
        %856 = vmatprep.subr.mxu0 0.0
        %857 = vmatpush1.xpose.msra.mxu0 0.0
        %858 = vmatprep.subr.mxu0 0.0
        %859 = vmatpush1.xpose.msra.mxu0 0.0
        %860 = vmatprep.subr.mxu0 0.0
        %861 = vmatpush1.xpose.msra.mxu0 0.0
        %862 = vmatprep.subr.mxu0 0.0
        %863 = vmatpush1.xpose.msra.mxu0 0.0
        %864 = vmatprep.subr.mxu0 0.0
        %865 = vmatpush1.xpose.msra.mxu0 0.0
        %866 = vmatprep.subr.mxu0 0.0
        %867 = vmatpush1.xpose.msra.mxu0 0.0
        %868 = vmatprep.subr.mxu0 0.0
        %869 = vmatpush1.xpose.msra.mxu0 0.0
        %870 = vmatprep.subr.mxu0 0.0
        %871 = vmatpush1.xpose.msra.mxu0 0.0
        %872 = vmatprep.subr.mxu0 0.0
        %873 = vmatpush1.xpose.msra.mxu0 0.0
        %874 = vmatprep.subr.mxu0 0.0
        %875 = vmatpush1.xpose.msra.mxu0 0.0
        %876 = vmatprep.subr.mxu0 0.0
        %877 = vmatpush1.xpose.msra.mxu0 0.0
        %878 = vmatprep.subr.mxu0 0.0
        %879 = vmatpush1.xpose.msra.mxu0 0.0
        %880 = vmatprep.subr.mxu0 0.0
        %881 = vmatpush1.xpose.msra.mxu0 0.0
        %882 = vmatprep.subr.mxu0 0.0
        %883 = vmatpush1.xpose.msra.mxu0 0.0
        %884 = vmatprep.subr.mxu0 0.0
        %885 = vmatpush1.xpose.msra.mxu0 0.0
        %886 = vmatprep.subr.mxu0 0.0
        %887 = vmatpush1.xpose.msra.mxu0 0.0
        %888 = vmatprep.subr.mxu0 0.0
        %889 = vmatpush1.xpose.msra.mxu0 0.0
        %890 = vmatprep.subr.mxu0 0.0
        %891 = vmatpush1.xpose.msra.mxu0 0.0
        %892 = vmatprep.subr.mxu0 0.0
        %893 = vmatpush1.xpose.msra.mxu0 0.0
        %894 = vmatprep.subr.mxu0 0.0
        %895 = vmatpush1.xpose.msra.mxu0 0.0
        %896 = vmatprep.subr.mxu0 0.0
        %897 = vmatpush1.xpose.msra.mxu0 0.0
        %898 = vmatprep.subr.mxu0 0.0
        %899 = vmatpush1.xpose.msra.mxu0 0.0
        %900 = vmatprep.subr.mxu0 0.0
        %901 = vmatpush1.xpose.msra.mxu0 0.0
        %902 = vmatprep.mubr.f32.mxu0 0.0
        %903 = vmatmul.mubr.f32.gmra.mrb[0].mxu0 %v830
        %v904 = vpop.f32.mrb[0].mxu0
        %v905 = vadd.f32 %v827, %v904
        %v906 = vpop.f32.mrb[0].mxu0
        %907 = vdwg.mxu0
        %908 = vrot.lane.b32.xlu0 %v361, 112
        %v909 = vpop.permute.xlu0 %908
        %910 = vrot.lane.b32.xlu0 %v366, 112
        %v911 = vpop.permute.xlu0 %910
        %912 = vrot.lane.b32.xlu0 %v440, 112
        %v913 = vpop.permute.xlu0 %912
        %914 = vrot.lane.b32.xlu0 %v445, 112
        %v915 = vpop.permute.xlu0 %914
        %v916 = vsel %vm522, %v909, 0
        %v918 = vsel %vm522, %v911, 0
        %v920 = vsel %vm522, %v913, 0
        %v922 = vsel %vm522, %v915, 0
        %924 = vmatprep.subr.mxu0 0.0
        %925 = vmatpush1.xpose.msra.mxu0 %v920
        %926 = vmatprep.subr.mxu0 0.0
        %927 = vmatpush1.xpose.msra.mxu0 %v922
        %928 = vmatprep.subr.mxu0 0.0
        %929 = vmatpush1.xpose.msra.mxu0 0.0
        %930 = vmatprep.subr.mxu0 0.0
        %931 = vmatpush1.xpose.msra.mxu0 0.0
        %932 = vmatprep.subr.mxu0 0.0
        %933 = vmatpush1.xpose.msra.mxu0 0.0
        %934 = vmatprep.subr.mxu0 0.0
        %935 = vmatpush1.xpose.msra.mxu0 0.0
        %936 = vmatprep.subr.mxu0 0.0
        %937 = vmatpush1.xpose.msra.mxu0 0.0
        %938 = vmatprep.subr.mxu0 0.0
        %939 = vmatpush1.xpose.msra.mxu0 0.0
        %940 = vmatprep.subr.mxu0 0.0
        %941 = vmatpush1.xpose.msra.mxu0 0.0
        %942 = vmatprep.subr.mxu0 0.0
        %943 = vmatpush1.xpose.msra.mxu0 0.0
        %944 = vmatprep.subr.mxu0 0.0
        %945 = vmatpush1.xpose.msra.mxu0 0.0
        %946 = vmatprep.subr.mxu0 0.0
        %947 = vmatpush1.xpose.msra.mxu0 0.0
        %948 = vmatprep.subr.mxu0 0.0
        %949 = vmatpush1.xpose.msra.mxu0 0.0
        %950 = vmatprep.subr.mxu0 0.0
        %951 = vmatpush1.xpose.msra.mxu0 0.0
        %952 = vmatprep.subr.mxu0 0.0
        %953 = vmatpush1.xpose.msra.mxu0 0.0
        %954 = vmatprep.subr.mxu0 0.0
        %955 = vmatpush1.xpose.msra.mxu0 0.0
        %956 = vmatprep.subr.mxu0 0.0
        %957 = vmatpush1.xpose.msra.mxu0 0.0
        %958 = vmatprep.subr.mxu0 0.0
        %959 = vmatpush1.xpose.msra.mxu0 0.0
        %960 = vmatprep.subr.mxu0 0.0
        %961 = vmatpush1.xpose.msra.mxu0 0.0
        %962 = vmatprep.subr.mxu0 0.0
        %963 = vmatpush1.xpose.msra.mxu0 0.0
        %964 = vmatprep.subr.mxu0 0.0
        %965 = vmatpush1.xpose.msra.mxu0 0.0
        %966 = vmatprep.subr.mxu0 0.0
        %967 = vmatpush1.xpose.msra.mxu0 0.0
        %968 = vmatprep.subr.mxu0 0.0
        %969 = vmatpush1.xpose.msra.mxu0 0.0
        %970 = vmatprep.subr.mxu0 0.0
        %971 = vmatpush1.xpose.msra.mxu0 0.0
        %972 = vmatprep.subr.mxu0 0.0
        %973 = vmatpush1.xpose.msra.mxu0 0.0
        %974 = vmatprep.subr.mxu0 0.0
        %975 = vmatpush1.xpose.msra.mxu0 0.0
        %976 = vmatprep.subr.mxu0 0.0
        %977 = vmatpush1.xpose.msra.mxu0 0.0
        %978 = vmatprep.subr.mxu0 0.0
        %979 = vmatpush1.xpose.msra.mxu0 0.0
        %980 = vmatprep.subr.mxu0 0.0
        %981 = vmatpush1.xpose.msra.mxu0 0.0
        %982 = vmatprep.subr.mxu0 0.0
        %983 = vmatpush1.xpose.msra.mxu0 0.0
        %984 = vmatprep.subr.mxu0 0.0
        %985 = vmatpush1.xpose.msra.mxu0 0.0
        %986 = vmatprep.subr.mxu0 0.0
        %987 = vmatpush1.xpose.msra.mxu0 0.0
        %988 = vmatprep.mubr.f32.mxu0 0.0
        %989 = vmatmul.mubr.f32.gmra.mrb[0].mxu0 %v916
        %v990 = vpop.f32.mrb[0].mxu0
        %v991 = vadd.f32 0.0, %v990
        %v992 = vpop.f32.mrb[0].mxu0
        %993 = vmatprep.mubr.f32.mxu0 0.0
        %994 = vmatmul.mubr.f32.gmra.mrb[0].mxu0 %v918
        %v995 = vpop.f32.mrb[0].mxu0
        %v996 = vadd.f32 0.0, %v995
        %v997 = vpop.f32.mrb[0].mxu0
        %998 = vdwg.mxu0
        %v999 = vmul.f32 %v991, 0.35355338
        %v1000 = vmul.f32 %v996, 0.35355338
        %v1001 = vsel %vm612, %v999, -inf
        %1002 = vmax.xlane.f32.xlu0 %v1001
        %v1003 = vpop.xlane.xlu0 %1002
        %v1004 = vsel %vm612, %v1000, -inf
        %1005 = vmax.xlane.f32.xlu0 %v1004
        %v1006 = vpop.xlane.xlu0 %1005
        %v1007 = vsub.f32 %v999, %v1003
        %v1008 = vsub.f32 %v1000, %v1006
        %v1009 = vmul.f32 %v1007, 1.442695
        %v1010 = vpow.pop %v1009
        %v1011 = vmul.f32 %v1008, 1.442695
        %v1012 = vpow.pop %v1011
        %v1013 = vsel %vm612, %v1010, 0.0
        %1014 = vadd.xlane.f32.xlu0 %v1013
        %v1015 = vpop.xlane.xlu0 %1014
        %v1016 = vsel %vm612, %v1012, 0.0
        %1017 = vadd.xlane.f32.xlu0 %v1016
        %v1018 = vpop.xlane.xlu0 %1017
        %v1019 = vrcp.pop %v1015
        %v1020 = vrcp.pop %v1018
        %v1021 = vmul.f32 %v1010, %v1019
        %v1022 = vmul.f32 %v1012, %v1020
        %v1023 = vrot.slane %v519, 2
        %v1024 = vsel %vm612, %v1023, 0
        %v1027 = vsel %vm612, %v1021, 0
        %v1030 = vsel %vm612, %v1022, 0
        %1032 = vmatprep.subr.mxu0 0.0
        %1033 = vmatpush1.xpose.msra.mxu0 %v1027
        %1034 = vmatprep.subr.mxu0 0.0
        %1035 = vmatpush1.xpose.msra.mxu0 %v1030
        %1036 = vmatprep.subr.mxu0 0.0
        %1037 = vmatpush1.xpose.msra.mxu0 0.0
        %1038 = vmatprep.subr.mxu0 0.0
        %1039 = vmatpush1.xpose.msra.mxu0 0.0
        %1040 = vmatprep.subr.mxu0 0.0
        %1041 = vmatpush1.xpose.msra.mxu0 0.0
        %1042 = vmatprep.subr.mxu0 0.0
        %1043 = vmatpush1.xpose.msra.mxu0 0.0
        %1044 = vmatprep.subr.mxu0 0.0
        %1045 = vmatpush1.xpose.msra.mxu0 0.0
        %1046 = vmatprep.subr.mxu0 0.0
        %1047 = vmatpush1.xpose.msra.mxu0 0.0
        %1048 = vmatprep.subr.mxu0 0.0
        %1049 = vmatpush1.xpose.msra.mxu0 0.0
        %1050 = vmatprep.subr.mxu0 0.0
        %1051 = vmatpush1.xpose.msra.mxu0 0.0
        %1052 = vmatprep.subr.mxu0 0.0
        %1053 = vmatpush1.xpose.msra.mxu0 0.0
        %1054 = vmatprep.subr.mxu0 0.0
        %1055 = vmatpush1.xpose.msra.mxu0 0.0
        %1056 = vmatprep.subr.mxu0 0.0
        %1057 = vmatpush1.xpose.msra.mxu0 0.0
        %1058 = vmatprep.subr.mxu0 0.0
        %1059 = vmatpush1.xpose.msra.mxu0 0.0
        %1060 = vmatprep.subr.mxu0 0.0
        %1061 = vmatpush1.xpose.msra.mxu0 0.0
        %1062 = vmatprep.subr.mxu0 0.0
        %1063 = vmatpush1.xpose.msra.mxu0 0.0
        %1064 = vmatprep.subr.mxu0 0.0
        %1065 = vmatpush1.xpose.msra.mxu0 0.0
        %1066 = vmatprep.subr.mxu0 0.0
        %1067 = vmatpush1.xpose.msra.mxu0 0.0
        %1068 = vmatprep.subr.mxu0 0.0
        %1069 = vmatpush1.xpose.msra.mxu0 0.0
        %1070 = vmatprep.subr.mxu0 0.0
        %1071 = vmatpush1.xpose.msra.mxu0 0.0
        %1072 = vmatprep.subr.mxu0 0.0
        %1073 = vmatpush1.xpose.msra.mxu0 0.0
        %1074 = vmatprep.subr.mxu0 0.0
        %1075 = vmatpush1.xpose.msra.mxu0 0.0
        %1076 = vmatprep.subr.mxu0 0.0
        %1077 = vmatpush1.xpose.msra.mxu0 0.0
        %1078 = vmatprep.subr.mxu0 0.0
        %1079 = vmatpush1.xpose.msra.mxu0 0.0
        %1080 = vmatprep.subr.mxu0 0.0
        %1081 = vmatpush1.xpose.msra.mxu0 0.0
        %1082 = vmatprep.subr.mxu0 0.0
        %1083 = vmatpush1.xpose.msra.mxu0 0.0
        %1084 = vmatprep.subr.mxu0 0.0
        %1085 = vmatpush1.xpose.msra.mxu0 0.0
        %1086 = vmatprep.subr.mxu0 0.0
        %1087 = vmatpush1.xpose.msra.mxu0 0.0
        %1088 = vmatprep.subr.mxu0 0.0
        %1089 = vmatpush1.xpose.msra.mxu0 0.0
        %1090 = vmatprep.subr.mxu0 0.0
        %1091 = vmatpush1.xpose.msra.mxu0 0.0
        %1092 = vmatprep.subr.mxu0 0.0
        %1093 = vmatpush1.xpose.msra.mxu0 0.0
        %1094 = vmatprep.subr.mxu0 0.0
        %1095 = vmatpush1.xpose.msra.mxu0 0.0
        %1096 = vmatprep.mubr.f32.mxu0 0.0
        %1097 = vmatmul.mubr.f32.gmra.mrb[0].mxu0 %v1024
        %v1098 = vpop.f32.mrb[0].mxu0
        %v1099 = vadd.f32 0.0, %v1098
        %v1100 = vpop.f32.mrb[0].mxu0
        %1101 = vdwg.mxu0
        %v1102 = vadd.f32 %v905, %v1099
        %1103 = vrot.lane.b32.xlu0 %v361, 104
        %v1104 = vpop.permute.xlu0 %1103
        %1105 = vrot.lane.b32.xlu0 %v366, 104
        %v1106 = vpop.permute.xlu0 %1105
        %1107 = vrot.lane.b32.xlu0 %v440, 104
        %v1108 = vpop.permute.xlu0 %1107
        %1109 = vrot.lane.b32.xlu0 %v445, 104
        %v1110 = vpop.permute.xlu0 %1109
        %v1111 = vsel %vm522, %v1104, 0
        %v1113 = vsel %vm522, %v1106, 0
        %v1115 = vsel %vm522, %v1108, 0
        %v1117 = vsel %vm522, %v1110, 0
        %1119 = vmatprep.subr.mxu0 0.0
        %1120 = vmatpush1.xpose.msra.mxu0 %v1115
        %1121 = vmatprep.subr.mxu0 0.0
        %1122 = vmatpush1.xpose.msra.mxu0 %v1117
        %1123 = vmatprep.subr.mxu0 0.0
        %1124 = vmatpush1.xpose.msra.mxu0 0.0
        %1125 = vmatprep.subr.mxu0 0.0
        %1126 = vmatpush1.xpose.msra.mxu0 0.0
        %1127 = vmatprep.subr.mxu0 0.0
        %1128 = vmatpush1.xpose.msra.mxu0 0.0
        %1129 = vmatprep.subr.mxu0 0.0
        %1130 = vmatpush1.xpose.msra.mxu0 0.0
        %1131 = vmatprep.subr.mxu0 0.0
        %1132 = vmatpush1.xpose.msra.mxu0 0.0
        %1133 = vmatprep.subr.mxu0 0.0
        %1134 = vmatpush1.xpose.msra.mxu0 0.0
        %1135 = vmatprep.subr.mxu0 0.0
        %1136 = vmatpush1.xpose.msra.mxu0 0.0
        %1137 = vmatprep.subr.mxu0 0.0
        %1138 = vmatpush1.xpose.msra.mxu0 0.0
        %1139 = vmatprep.subr.mxu0 0.0
        %1140 = vmatpush1.xpose.msra.mxu0 0.0
        %1141 = vmatprep.subr.mxu0 0.0
        %1142 = vmatpush1.xpose.msra.mxu0 0.0
        %1143 = vmatprep.subr.mxu0 0.0
        %1144 = vmatpush1.xpose.msra.mxu0 0.0
        %1145 = vmatprep.subr.mxu0 0.0
        %1146 = vmatpush1.xpose.msra.mxu0 0.0
        %1147 = vmatprep.subr.mxu0 0.0
        %1148 = vmatpush1.xpose.msra.mxu0 0.0
        %1149 = vmatprep.subr.mxu0 0.0
        %1150 = vmatpush1.xpose.msra.mxu0 0.0
        %1151 = vmatprep.subr.mxu0 0.0
        %1152 = vmatpush1.xpose.msra.mxu0 0.0
        %1153 = vmatprep.subr.mxu0 0.0
        %1154 = vmatpush1.xpose.msra.mxu0 0.0
        %1155 = vmatprep.subr.mxu0 0.0
        %1156 = vmatpush1.xpose.msra.mxu0 0.0
        %1157 = vmatprep.subr.mxu0 0.0
        %1158 = vmatpush1.xpose.msra.mxu0 0.0
        %1159 = vmatprep.subr.mxu0 0.0
        %1160 = vmatpush1.xpose.msra.mxu0 0.0
        %1161 = vmatprep.subr.mxu0 0.0
        %1162 = vmatpush1.xpose.msra.mxu0 0.0
        %1163 = vmatprep.subr.mxu0 0.0
        %1164 = vmatpush1.xpose.msra.mxu0 0.0
        %1165 = vmatprep.subr.mxu0 0.0
        %1166 = vmatpush1.xpose.msra.mxu0 0.0
        %1167 = vmatprep.subr.mxu0 0.0
        %1168 = vmatpush1.xpose.msra.mxu0 0.0
        %1169 = vmatprep.subr.mxu0 0.0
        %1170 = vmatpush1.xpose.msra.mxu0 0.0
        %1171 = vmatprep.subr.mxu0 0.0
        %1172 = vmatpush1.xpose.msra.mxu0 0.0
        %1173 = vmatprep.subr.mxu0 0.0
        %1174 = vmatpush1.xpose.msra.mxu0 0.0
        %1175 = vmatprep.subr.mxu0 0.0
        %1176 = vmatpush1.xpose.msra.mxu0 0.0
        %1177 = vmatprep.subr.mxu0 0.0
        %1178 = vmatpush1.xpose.msra.mxu0 0.0
        %1179 = vmatprep.subr.mxu0 0.0
        %1180 = vmatpush1.xpose.msra.mxu0 0.0
        %1181 = vmatprep.subr.mxu0 0.0
        %1182 = vmatpush1.xpose.msra.mxu0 0.0
        %1183 = vmatprep.mubr.f32.mxu0 0.0
        %1184 = vmatmul.mubr.f32.gmra.mrb[0].mxu0 %v1111
        %v1185 = vpop.f32.mrb[0].mxu0
        %v1186 = vadd.f32 0.0, %v1185
        %v1187 = vpop.f32.mrb[0].mxu0
        %1188 = vmatprep.mubr.f32.mxu0 0.0
        %1189 = vmatmul.mubr.f32.gmra.mrb[0].mxu0 %v1113
        %v1190 = vpop.f32.mrb[0].mxu0
        %v1191 = vadd.f32 0.0, %v1190
        %v1192 = vpop.f32.mrb[0].mxu0
        %1193 = vdwg.mxu0
        %v1194 = vmul.f32 %v1186, 0.35355338
        %v1195 = vmul.f32 %v1191, 0.35355338
        %v1196 = vsel %vm612, %v1194, -inf
        %1197 = vmax.xlane.f32.xlu0 %v1196
        %v1198 = vpop.xlane.xlu0 %1197
        %v1199 = vsel %vm612, %v1195, -inf
        %1200 = vmax.xlane.f32.xlu0 %v1199
        %v1201 = vpop.xlane.xlu0 %1200
        %v1202 = vsub.f32 %v1194, %v1198
        %v1203 = vsub.f32 %v1195, %v1201
        %v1204 = vmul.f32 %v1202, 1.442695
        %v1205 = vpow.pop %v1204
        %v1206 = vmul.f32 %v1203, 1.442695
        %v1207 = vpow.pop %v1206
        %v1208 = vsel %vm612, %v1205, 0.0
        %1209 = vadd.xlane.f32.xlu0 %v1208
        %v1210 = vpop.xlane.xlu0 %1209
        %v1211 = vsel %vm612, %v1207, 0.0
        %1212 = vadd.xlane.f32.xlu0 %v1211
        %v1213 = vpop.xlane.xlu0 %1212
        %v1214 = vrcp.pop %v1210
        %v1215 = vrcp.pop %v1213
        %v1216 = vmul.f32 %v1205, %v1214
        %v1217 = vmul.f32 %v1207, %v1215
        %v1218 = vrot.slane %v519, 3
        %v1219 = vsel %vm612, %v1218, 0
        %v1222 = vsel %vm612, %v1216, 0
        %v1225 = vsel %vm612, %v1217, 0
        %1227 = vmatprep.subr.mxu0 0.0
        %1228 = vmatpush1.xpose.msra.mxu0 %v1222
        %1229 = vmatprep.subr.mxu0 0.0
        %1230 = vmatpush1.xpose.msra.mxu0 %v1225
        %1231 = vmatprep.subr.mxu0 0.0
        %1232 = vmatpush1.xpose.msra.mxu0 0.0
        %1233 = vmatprep.subr.mxu0 0.0
        %1234 = vmatpush1.xpose.msra.mxu0 0.0
        %1235 = vmatprep.subr.mxu0 0.0
        %1236 = vmatpush1.xpose.msra.mxu0 0.0
        %1237 = vmatprep.subr.mxu0 0.0
        %1238 = vmatpush1.xpose.msra.mxu0 0.0
        %1239 = vmatprep.subr.mxu0 0.0
        %1240 = vmatpush1.xpose.msra.mxu0 0.0
        %1241 = vmatprep.subr.mxu0 0.0
        %1242 = vmatpush1.xpose.msra.mxu0 0.0
        %1243 = vmatprep.subr.mxu0 0.0
        %1244 = vmatpush1.xpose.msra.mxu0 0.0
        %1245 = vmatprep.subr.mxu0 0.0
        %1246 = vmatpush1.xpose.msra.mxu0 0.0
        %1247 = vmatprep.subr.mxu0 0.0
        %1248 = vmatpush1.xpose.msra.mxu0 0.0
        %1249 = vmatprep.subr.mxu0 0.0
        %1250 = vmatpush1.xpose.msra.mxu0 0.0
        %1251 = vmatprep.subr.mxu0 0.0
        %1252 = vmatpush1.xpose.msra.mxu0 0.0
        %1253 = vmatprep.subr.mxu0 0.0
        %1254 = vmatpush1.xpose.msra.mxu0 0.0
        %1255 = vmatprep.subr.mxu0 0.0
        %1256 = vmatpush1.xpose.msra.mxu0 0.0
        %1257 = vmatprep.subr.mxu0 0.0
        %1258 = vmatpush1.xpose.msra.mxu0 0.0
        %1259 = vmatprep.subr.mxu0 0.0
        %1260 = vmatpush1.xpose.msra.mxu0 0.0
        %1261 = vmatprep.subr.mxu0 0.0
        %1262 = vmatpush1.xpose.msra.mxu0 0.0
        %1263 = vmatprep.subr.mxu0 0.0
        %1264 = vmatpush1.xpose.msra.mxu0 0.0
        %1265 = vmatprep.subr.mxu0 0.0
        %1266 = vmatpush1.xpose.msra.mxu0 0.0
        %1267 = vmatprep.subr.mxu0 0.0
        %1268 = vmatpush1.xpose.msra.mxu0 0.0
        %1269 = vmatprep.subr.mxu0 0.0
        %1270 = vmatpush1.xpose.msra.mxu0 0.0
        %1271 = vmatprep.subr.mxu0 0.0
        %1272 = vmatpush1.xpose.msra.mxu0 0.0
        %1273 = vmatprep.subr.mxu0 0.0
        %1274 = vmatpush1.xpose.msra.mxu0 0.0
        %1275 = vmatprep.subr.mxu0 0.0
        %1276 = vmatpush1.xpose.msra.mxu0 0.0
        %1277 = vmatprep.subr.mxu0 0.0
        %1278 = vmatpush1.xpose.msra.mxu0 0.0
        %1279 = vmatprep.subr.mxu0 0.0
        %1280 = vmatpush1.xpose.msra.mxu0 0.0
        %1281 = vmatprep.subr.mxu0 0.0
        %1282 = vmatpush1.xpose.msra.mxu0 0.0
        %1283 = vmatprep.subr.mxu0 0.0
        %1284 = vmatpush1.xpose.msra.mxu0 0.0
        %1285 = vmatprep.subr.mxu0 0.0
        %1286 = vmatpush1.xpose.msra.mxu0 0.0
        %1287 = vmatprep.subr.mxu0 0.0
        %1288 = vmatpush1.xpose.msra.mxu0 0.0
        %1289 = vmatprep.subr.mxu0 0.0
        %1290 = vmatpush1.xpose.msra.mxu0 0.0
        %1291 = vmatprep.mubr.f32.mxu0 0.0
        %1292 = vmatmul.mubr.f32.gmra.mrb[0].mxu0 %v1219
        %v1293 = vpop.f32.mrb[0].mxu0
        %v1294 = vadd.f32 0.0, %v1293
        %v1295 = vpop.f32.mrb[0].mxu0
        %1296 = vdwg.mxu0
        %v1297 = vadd.f32 %v1102, %v1294
        %vm1298 = vcmask 122880
        %1299 = vst.msk [vmem:[%s274] sm:$0x1] %vm1298, %v1297
        %1300 = vrot.lane.b32.xlu0 %v361, 96
        %v1301 = vpop.permute.xlu0 %1300
        %1302 = vrot.lane.b32.xlu0 %v366, 96
        %v1303 = vpop.permute.xlu0 %1302
        %1304 = vrot.lane.b32.xlu0 %v440, 96
        %v1305 = vpop.permute.xlu0 %1304
        %1306 = vrot.lane.b32.xlu0 %v445, 96
        %v1307 = vpop.permute.xlu0 %1306
        %v1308 = vsel %vm522, %v1301, 0
        %v1310 = vsel %vm522, %v1303, 0
        %v1312 = vsel %vm522, %v1305, 0
        %v1314 = vsel %vm522, %v1307, 0
        %1316 = vmatprep.subr.mxu0 0.0
        %1317 = vmatpush1.xpose.msra.mxu0 %v1312
        %1318 = vmatprep.subr.mxu0 0.0
        %1319 = vmatpush1.xpose.msra.mxu0 %v1314
        %1320 = vmatprep.subr.mxu0 0.0
        %1321 = vmatpush1.xpose.msra.mxu0 0.0
        %1322 = vmatprep.subr.mxu0 0.0
        %1323 = vmatpush1.xpose.msra.mxu0 0.0
        %1324 = vmatprep.subr.mxu0 0.0
        %1325 = vmatpush1.xpose.msra.mxu0 0.0
        %1326 = vmatprep.subr.mxu0 0.0
        %1327 = vmatpush1.xpose.msra.mxu0 0.0
        %1328 = vmatprep.subr.mxu0 0.0
        %1329 = vmatpush1.xpose.msra.mxu0 0.0
        %1330 = vmatprep.subr.mxu0 0.0
        %1331 = vmatpush1.xpose.msra.mxu0 0.0
        %1332 = vmatprep.subr.mxu0 0.0
        %1333 = vmatpush1.xpose.msra.mxu0 0.0
        %1334 = vmatprep.subr.mxu0 0.0
        %1335 = vmatpush1.xpose.msra.mxu0 0.0
        %1336 = vmatprep.subr.mxu0 0.0
        %1337 = vmatpush1.xpose.msra.mxu0 0.0
        %1338 = vmatprep.subr.mxu0 0.0
        %1339 = vmatpush1.xpose.msra.mxu0 0.0
        %1340 = vmatprep.subr.mxu0 0.0
        %1341 = vmatpush1.xpose.msra.mxu0 0.0
        %1342 = vmatprep.subr.mxu0 0.0
        %1343 = vmatpush1.xpose.msra.mxu0 0.0
        %1344 = vmatprep.subr.mxu0 0.0
        %1345 = vmatpush1.xpose.msra.mxu0 0.0
        %1346 = vmatprep.subr.mxu0 0.0
        %1347 = vmatpush1.xpose.msra.mxu0 0.0
        %1348 = vmatprep.subr.mxu0 0.0
        %1349 = vmatpush1.xpose.msra.mxu0 0.0
        %1350 = vmatprep.subr.mxu0 0.0
        %1351 = vmatpush1.xpose.msra.mxu0 0.0
        %1352 = vmatprep.subr.mxu0 0.0
        %1353 = vmatpush1.xpose.msra.mxu0 0.0
        %1354 = vmatprep.subr.mxu0 0.0
        %1355 = vmatpush1.xpose.msra.mxu0 0.0
        %1356 = vmatprep.subr.mxu0 0.0
        %1357 = vmatpush1.xpose.msra.mxu0 0.0
        %1358 = vmatprep.subr.mxu0 0.0
        %1359 = vmatpush1.xpose.msra.mxu0 0.0
        %1360 = vmatprep.subr.mxu0 0.0
        %1361 = vmatpush1.xpose.msra.mxu0 0.0
        %1362 = vmatprep.subr.mxu0 0.0
        %1363 = vmatpush1.xpose.msra.mxu0 0.0
        %1364 = vmatprep.subr.mxu0 0.0
        %1365 = vmatpush1.xpose.msra.mxu0 0.0
        %1366 = vmatprep.subr.mxu0 0.0
        %1367 = vmatpush1.xpose.msra.mxu0 0.0
        %1368 = vmatprep.subr.mxu0 0.0
        %1369 = vmatpush1.xpose.msra.mxu0 0.0
        %1370 = vmatprep.subr.mxu0 0.0
        %1371 = vmatpush1.xpose.msra.mxu0 0.0
        %1372 = vmatprep.subr.mxu0 0.0
        %1373 = vmatpush1.xpose.msra.mxu0 0.0
        %1374 = vmatprep.subr.mxu0 0.0
        %1375 = vmatpush1.xpose.msra.mxu0 0.0
        %1376 = vmatprep.subr.mxu0 0.0
        %1377 = vmatpush1.xpose.msra.mxu0 0.0
        %1378 = vmatprep.subr.mxu0 0.0
        %1379 = vmatpush1.xpose.msra.mxu0 0.0
        %1380 = vmatprep.mubr.f32.mxu0 0.0
        %1381 = vmatmul.mubr.f32.gmra.mrb[0].mxu0 %v1308
        %v1382 = vpop.f32.mrb[0].mxu0
        %v1383 = vadd.f32 0.0, %v1382
        %v1384 = vpop.f32.mrb[0].mxu0
        %1385 = vmatprep.mubr.f32.mxu0 0.0
        %1386 = vmatmul.mubr.f32.gmra.mrb[0].mxu0 %v1310
        %v1387 = vpop.f32.mrb[0].mxu0
        %v1388 = vadd.f32 0.0, %v1387
        %v1389 = vpop.f32.mrb[0].mxu0
        %1390 = vdwg.mxu0
        %v1391 = vmul.f32 %v1383, 0.35355338
        %v1392 = vmul.f32 %v1388, 0.35355338
        %v1393 = vsel %vm612, %v1391, -inf
        %1394 = vmax.xlane.f32.xlu0 %v1393
        %v1395 = vpop.xlane.xlu0 %1394
        %v1396 = vsel %vm612, %v1392, -inf
        %1397 = vmax.xlane.f32.xlu0 %v1396
        %v1398 = vpop.xlane.xlu0 %1397
        %v1399 = vsub.f32 %v1391, %v1395
        %v1400 = vsub.f32 %v1392, %v1398
        %v1401 = vmul.f32 %v1399, 1.442695
        %v1402 = vpow.pop %v1401
        %v1403 = vmul.f32 %v1400, 1.442695
        %v1404 = vpow.pop %v1403
        %v1405 = vsel %vm612, %v1402, 0.0
        %1406 = vadd.xlane.f32.xlu0 %v1405
        %v1407 = vpop.xlane.xlu0 %1406
        %v1408 = vsel %vm612, %v1404, 0.0
        %1409 = vadd.xlane.f32.xlu0 %v1408
        %v1410 = vpop.xlane.xlu0 %1409
        %v1411 = vrcp.pop %v1407
        %v1412 = vrcp.pop %v1410
        %v1413 = vmul.f32 %v1402, %v1411
        %v1414 = vmul.f32 %v1404, %v1412
        %1415 = vrot.lane.b32.xlu0 %v361, 88
        %v1416 = vpop.permute.xlu0 %1415
        %1417 = vrot.lane.b32.xlu0 %v366, 88
        %v1418 = vpop.permute.xlu0 %1417
        %1419 = vrot.lane.b32.xlu0 %v440, 88
        %v1420 = vpop.permute.xlu0 %1419
        %1421 = vrot.lane.b32.xlu0 %v445, 88
        %v1422 = vpop.permute.xlu0 %1421
        %v1423 = vsel %vm522, %v1416, 0
        %v1425 = vsel %vm522, %v1418, 0
        %v1427 = vsel %vm522, %v1420, 0
        %v1429 = vsel %vm522, %v1422, 0
        %1431 = vmatprep.subr.mxu0 0.0
        %1432 = vmatpush1.xpose.msra.mxu0 %v1427
        %1433 = vmatprep.subr.mxu0 0.0
        %1434 = vmatpush1.xpose.msra.mxu0 %v1429
        %1435 = vmatprep.subr.mxu0 0.0
        %1436 = vmatpush1.xpose.msra.mxu0 0.0
        %1437 = vmatprep.subr.mxu0 0.0
        %1438 = vmatpush1.xpose.msra.mxu0 0.0
        %1439 = vmatprep.subr.mxu0 0.0
        %1440 = vmatpush1.xpose.msra.mxu0 0.0
        %1441 = vmatprep.subr.mxu0 0.0
        %1442 = vmatpush1.xpose.msra.mxu0 0.0
        %1443 = vmatprep.subr.mxu0 0.0
        %1444 = vmatpush1.xpose.msra.mxu0 0.0
        %1445 = vmatprep.subr.mxu0 0.0
        %1446 = vmatpush1.xpose.msra.mxu0 0.0
        %1447 = vmatprep.subr.mxu0 0.0
        %1448 = vmatpush1.xpose.msra.mxu0 0.0
        %1449 = vmatprep.subr.mxu0 0.0
        %1450 = vmatpush1.xpose.msra.mxu0 0.0
        %1451 = vmatprep.subr.mxu0 0.0
        %1452 = vmatpush1.xpose.msra.mxu0 0.0
        %1453 = vmatprep.subr.mxu0 0.0
        %1454 = vmatpush1.xpose.msra.mxu0 0.0
        %1455 = vmatprep.subr.mxu0 0.0
        %1456 = vmatpush1.xpose.msra.mxu0 0.0
        %1457 = vmatprep.subr.mxu0 0.0
        %1458 = vmatpush1.xpose.msra.mxu0 0.0
        %1459 = vmatprep.subr.mxu0 0.0
        %1460 = vmatpush1.xpose.msra.mxu0 0.0
        %1461 = vmatprep.subr.mxu0 0.0
        %1462 = vmatpush1.xpose.msra.mxu0 0.0
        %1463 = vmatprep.subr.mxu0 0.0
        %1464 = vmatpush1.xpose.msra.mxu0 0.0
        %1465 = vmatprep.subr.mxu0 0.0
        %1466 = vmatpush1.xpose.msra.mxu0 0.0
        %1467 = vmatprep.subr.mxu0 0.0
        %1468 = vmatpush1.xpose.msra.mxu0 0.0
        %1469 = vmatprep.subr.mxu0 0.0
        %1470 = vmatpush1.xpose.msra.mxu0 0.0
        %1471 = vmatprep.subr.mxu0 0.0
        %1472 = vmatpush1.xpose.msra.mxu0 0.0
        %1473 = vmatprep.subr.mxu0 0.0
        %1474 = vmatpush1.xpose.msra.mxu0 0.0
        %1475 = vmatprep.subr.mxu0 0.0
        %1476 = vmatpush1.xpose.msra.mxu0 0.0
        %1477 = vmatprep.subr.mxu0 0.0
        %1478 = vmatpush1.xpose.msra.mxu0 0.0
        %1479 = vmatprep.subr.mxu0 0.0
        %1480 = vmatpush1.xpose.msra.mxu0 0.0
        %1481 = vmatprep.subr.mxu0 0.0
        %1482 = vmatpush1.xpose.msra.mxu0 0.0
        %1483 = vmatprep.subr.mxu0 0.0
        %1484 = vmatpush1.xpose.msra.mxu0 0.0
        %1485 = vmatprep.subr.mxu0 0.0
        %1486 = vmatpush1.xpose.msra.mxu0 0.0
        %1487 = vmatprep.subr.mxu0 0.0
        %1488 = vmatpush1.xpose.msra.mxu0 0.0
        %1489 = vmatprep.subr.mxu0 0.0
        %1490 = vmatpush1.xpose.msra.mxu0 0.0
        %1491 = vmatprep.subr.mxu0 0.0
        %1492 = vmatpush1.xpose.msra.mxu0 0.0
        %1493 = vmatprep.subr.mxu0 0.0
        %1494 = vmatpush1.xpose.msra.mxu0 0.0
        %1495 = vmatprep.mubr.f32.mxu0 0.0
        %1496 = vmatmul.mubr.f32.gmra.mrb[0].mxu0 %v1423
        %v1497 = vpop.f32.mrb[0].mxu0
        %v1498 = vadd.f32 0.0, %v1497
        %v1499 = vpop.f32.mrb[0].mxu0
        %1500 = vmatprep.mubr.f32.mxu0 0.0
        %1501 = vmatmul.mubr.f32.gmra.mrb[0].mxu0 %v1425
        %v1502 = vpop.f32.mrb[0].mxu0
        %v1503 = vadd.f32 0.0, %v1502
        %v1504 = vpop.f32.mrb[0].mxu0
        %1505 = vdwg.mxu0
        %v1506 = vmul.f32 %v1498, 0.35355338
        %v1507 = vmul.f32 %v1503, 0.35355338
        %v1508 = vsel %vm612, %v1506, -inf
        %1509 = vmax.xlane.f32.xlu0 %v1508
        %v1510 = vpop.xlane.xlu0 %1509
        %v1511 = vsel %vm612, %v1507, -inf
        %1512 = vmax.xlane.f32.xlu0 %v1511
        %v1513 = vpop.xlane.xlu0 %1512
        %v1514 = vsub.f32 %v1506, %v1510
        %v1515 = vsub.f32 %v1507, %v1513
        %v1516 = vmul.f32 %v1514, 1.442695
        %v1517 = vpow.pop %v1516
        %v1518 = vmul.f32 %v1515, 1.442695
        %v1519 = vpow.pop %v1518
        %v1520 = vsel %vm612, %v1517, 0.0
        %1521 = vadd.xlane.f32.xlu0 %v1520
        %v1522 = vpop.xlane.xlu0 %1521
        %v1523 = vsel %vm612, %v1519, 0.0
        %1524 = vadd.xlane.f32.xlu0 %v1523
        %v1525 = vpop.xlane.xlu0 %1524
        %v1526 = vrcp.pop %v1522
        %v1527 = vrcp.pop %v1525
        %v1528 = vmul.f32 %v1517, %v1526
        %v1529 = vmul.f32 %v1519, %v1527
        %v1530 = vrot.slane %v519, 5
        %v1531 = vsel %vm612, %v1530, 0
        %v1534 = vsel %vm612, %v1528, 0
        %v1537 = vsel %vm612, %v1529, 0
        %1539 = vmatprep.subr.mxu0 0.0
        %1540 = vmatpush1.xpose.msra.mxu0 %v1534
        %1541 = vmatprep.subr.mxu0 0.0
        %1542 = vmatpush1.xpose.msra.mxu0 %v1537
        %1543 = vmatprep.subr.mxu0 0.0
        %1544 = vmatpush1.xpose.msra.mxu0 0.0
        %1545 = vmatprep.subr.mxu0 0.0
        %1546 = vmatpush1.xpose.msra.mxu0 0.0
        %1547 = vmatprep.subr.mxu0 0.0
        %1548 = vmatpush1.xpose.msra.mxu0 0.0
        %1549 = vmatprep.subr.mxu0 0.0
        %1550 = vmatpush1.xpose.msra.mxu0 0.0
        %1551 = vmatprep.subr.mxu0 0.0
        %1552 = vmatpush1.xpose.msra.mxu0 0.0
        %1553 = vmatprep.subr.mxu0 0.0
        %1554 = vmatpush1.xpose.msra.mxu0 0.0
        %1555 = vmatprep.subr.mxu0 0.0
        %1556 = vmatpush1.xpose.msra.mxu0 0.0
        %1557 = vmatprep.subr.mxu0 0.0
        %1558 = vmatpush1.xpose.msra.mxu0 0.0
        %1559 = vmatprep.subr.mxu0 0.0
        %1560 = vmatpush1.xpose.msra.mxu0 0.0
        %1561 = vmatprep.subr.mxu0 0.0
        %1562 = vmatpush1.xpose.msra.mxu0 0.0
        %1563 = vmatprep.subr.mxu0 0.0
        %1564 = vmatpush1.xpose.msra.mxu0 0.0
        %1565 = vmatprep.subr.mxu0 0.0
        %1566 = vmatpush1.xpose.msra.mxu0 0.0
        %1567 = vmatprep.subr.mxu0 0.0
        %1568 = vmatpush1.xpose.msra.mxu0 0.0
        %1569 = vmatprep.subr.mxu0 0.0
        %1570 = vmatpush1.xpose.msra.mxu0 0.0
        %1571 = vmatprep.subr.mxu0 0.0
        %1572 = vmatpush1.xpose.msra.mxu0 0.0
        %1573 = vmatprep.subr.mxu0 0.0
        %1574 = vmatpush1.xpose.msra.mxu0 0.0
        %1575 = vmatprep.subr.mxu0 0.0
        %1576 = vmatpush1.xpose.msra.mxu0 0.0
        %1577 = vmatprep.subr.mxu0 0.0
        %1578 = vmatpush1.xpose.msra.mxu0 0.0
        %1579 = vmatprep.subr.mxu0 0.0
        %1580 = vmatpush1.xpose.msra.mxu0 0.0
        %1581 = vmatprep.subr.mxu0 0.0
        %1582 = vmatpush1.xpose.msra.mxu0 0.0
        %1583 = vmatprep.subr.mxu0 0.0
        %1584 = vmatpush1.xpose.msra.mxu0 0.0
        %1585 = vmatprep.subr.mxu0 0.0
        %1586 = vmatpush1.xpose.msra.mxu0 0.0
        %1587 = vmatprep.subr.mxu0 0.0
        %1588 = vmatpush1.xpose.msra.mxu0 0.0
        %1589 = vmatprep.subr.mxu0 0.0
        %1590 = vmatpush1.xpose.msra.mxu0 0.0
        %1591 = vmatprep.subr.mxu0 0.0
        %1592 = vmatpush1.xpose.msra.mxu0 0.0
        %1593 = vmatprep.subr.mxu0 0.0
        %1594 = vmatpush1.xpose.msra.mxu0 0.0
        %1595 = vmatprep.subr.mxu0 0.0
        %1596 = vmatpush1.xpose.msra.mxu0 0.0
        %1597 = vmatprep.subr.mxu0 0.0
        %1598 = vmatpush1.xpose.msra.mxu0 0.0
        %1599 = vmatprep.subr.mxu0 0.0
        %1600 = vmatpush1.xpose.msra.mxu0 0.0
        %1601 = vmatprep.subr.mxu0 0.0
        %1602 = vmatpush1.xpose.msra.mxu0 0.0
        %1603 = vmatprep.mubr.f32.mxu0 0.0
        %1604 = vmatmul.mubr.f32.gmra.mrb[0].mxu0 %v1531
        %v1605 = vpop.f32.mrb[0].mxu0
        %v1606 = vadd.f32 0.0, %v1605
        %v1607 = vpop.f32.mrb[0].mxu0
        %1608 = vdwg.mxu0
        %v1609 = vrot.slane %v519, 4
        %v1610 = vsel %vm612, %v1609, 0
        %v1613 = vsel %vm612, %v1413, 0
        %v1616 = vsel %vm612, %v1414, 0
        %1618 = vmatprep.subr.mxu0 0.0
        %1619 = vmatpush1.xpose.msra.mxu0 %v1613
        %1620 = vmatprep.subr.mxu0 0.0
        %1621 = vmatpush1.xpose.msra.mxu0 %v1616
        %1622 = vmatprep.subr.mxu0 0.0
        %1623 = vmatpush1.xpose.msra.mxu0 0.0
        %1624 = vmatprep.subr.mxu0 0.0
        %1625 = vmatpush1.xpose.msra.mxu0 0.0
        %1626 = vmatprep.subr.mxu0 0.0
        %1627 = vmatpush1.xpose.msra.mxu0 0.0
        %1628 = vmatprep.subr.mxu0 0.0
        %1629 = vmatpush1.xpose.msra.mxu0 0.0
        %1630 = vmatprep.subr.mxu0 0.0
        %1631 = vmatpush1.xpose.msra.mxu0 0.0
        %1632 = vmatprep.subr.mxu0 0.0
        %1633 = vmatpush1.xpose.msra.mxu0 0.0
        %1634 = vmatprep.subr.mxu0 0.0
        %1635 = vmatpush1.xpose.msra.mxu0 0.0
        %1636 = vmatprep.subr.mxu0 0.0
        %1637 = vmatpush1.xpose.msra.mxu0 0.0
        %1638 = vmatprep.subr.mxu0 0.0
        %1639 = vmatpush1.xpose.msra.mxu0 0.0
        %1640 = vmatprep.subr.mxu0 0.0
        %1641 = vmatpush1.xpose.msra.mxu0 0.0
        %1642 = vmatprep.subr.mxu0 0.0
        %1643 = vmatpush1.xpose.msra.mxu0 0.0
        %1644 = vmatprep.subr.mxu0 0.0
        %1645 = vmatpush1.xpose.msra.mxu0 0.0
        %1646 = vmatprep.subr.mxu0 0.0
        %1647 = vmatpush1.xpose.msra.mxu0 0.0
        %1648 = vmatprep.subr.mxu0 0.0
        %1649 = vmatpush1.xpose.msra.mxu0 0.0
        %1650 = vmatprep.subr.mxu0 0.0
        %1651 = vmatpush1.xpose.msra.mxu0 0.0
        %1652 = vmatprep.subr.mxu0 0.0
        %1653 = vmatpush1.xpose.msra.mxu0 0.0
        %1654 = vmatprep.subr.mxu0 0.0
        %1655 = vmatpush1.xpose.msra.mxu0 0.0
        %1656 = vmatprep.subr.mxu0 0.0
        %1657 = vmatpush1.xpose.msra.mxu0 0.0
        %1658 = vmatprep.subr.mxu0 0.0
        %1659 = vmatpush1.xpose.msra.mxu0 0.0
        %1660 = vmatprep.subr.mxu0 0.0
        %1661 = vmatpush1.xpose.msra.mxu0 0.0
        %1662 = vmatprep.subr.mxu0 0.0
        %1663 = vmatpush1.xpose.msra.mxu0 0.0
        %1664 = vmatprep.subr.mxu0 0.0
        %1665 = vmatpush1.xpose.msra.mxu0 0.0
        %1666 = vmatprep.subr.mxu0 0.0
        %1667 = vmatpush1.xpose.msra.mxu0 0.0
        %1668 = vmatprep.subr.mxu0 0.0
        %1669 = vmatpush1.xpose.msra.mxu0 0.0
        %1670 = vmatprep.subr.mxu0 0.0
        %1671 = vmatpush1.xpose.msra.mxu0 0.0
        %1672 = vmatprep.subr.mxu0 0.0
        %1673 = vmatpush1.xpose.msra.mxu0 0.0
        %1674 = vmatprep.subr.mxu0 0.0
        %1675 = vmatpush1.xpose.msra.mxu0 0.0
        %1676 = vmatprep.subr.mxu0 0.0
        %1677 = vmatpush1.xpose.msra.mxu0 0.0
        %1678 = vmatprep.subr.mxu0 0.0
        %1679 = vmatpush1.xpose.msra.mxu0 0.0
        %1680 = vmatprep.subr.mxu0 0.0
        %1681 = vmatpush1.xpose.msra.mxu0 0.0
        %1682 = vmatprep.mubr.f32.mxu0 0.0
        %1683 = vmatmul.mubr.f32.gmra.mrb[0].mxu0 %v1610
        %v1684 = vpop.f32.mrb[0].mxu0
        %v1685 = vadd.f32 %v1606, %v1684
        %v1686 = vpop.f32.mrb[0].mxu0
        %1687 = vdwg.mxu0
        %1688 = vrot.lane.b32.xlu0 %v361, 80
        %v1689 = vpop.permute.xlu0 %1688
        %1690 = vrot.lane.b32.xlu0 %v366, 80
        %v1691 = vpop.permute.xlu0 %1690
        %1692 = vrot.lane.b32.xlu0 %v440, 80
        %v1693 = vpop.permute.xlu0 %1692
        %1694 = vrot.lane.b32.xlu0 %v445, 80
        %v1695 = vpop.permute.xlu0 %1694
        %v1696 = vsel %vm522, %v1689, 0
        %v1698 = vsel %vm522, %v1691, 0
        %v1700 = vsel %vm522, %v1693, 0
        %v1702 = vsel %vm522, %v1695, 0
        %1704 = vmatprep.subr.mxu0 0.0
        %1705 = vmatpush1.xpose.msra.mxu0 %v1700
        %1706 = vmatprep.subr.mxu0 0.0
        %1707 = vmatpush1.xpose.msra.mxu0 %v1702
        %1708 = vmatprep.subr.mxu0 0.0
        %1709 = vmatpush1.xpose.msra.mxu0 0.0
        %1710 = vmatprep.subr.mxu0 0.0
        %1711 = vmatpush1.xpose.msra.mxu0 0.0
        %1712 = vmatprep.subr.mxu0 0.0
        %1713 = vmatpush1.xpose.msra.mxu0 0.0
        %1714 = vmatprep.subr.mxu0 0.0
        %1715 = vmatpush1.xpose.msra.mxu0 0.0
        %1716 = vmatprep.subr.mxu0 0.0
        %1717 = vmatpush1.xpose.msra.mxu0 0.0
        %1718 = vmatprep.subr.mxu0 0.0
        %1719 = vmatpush1.xpose.msra.mxu0 0.0
        %1720 = vmatprep.subr.mxu0 0.0
        %1721 = vmatpush1.xpose.msra.mxu0 0.0
        %1722 = vmatprep.subr.mxu0 0.0
        %1723 = vmatpush1.xpose.msra.mxu0 0.0
        %1724 = vmatprep.subr.mxu0 0.0
        %1725 = vmatpush1.xpose.msra.mxu0 0.0
        %1726 = vmatprep.subr.mxu0 0.0
        %1727 = vmatpush1.xpose.msra.mxu0 0.0
        %1728 = vmatprep.subr.mxu0 0.0
        %1729 = vmatpush1.xpose.msra.mxu0 0.0
        %1730 = vmatprep.subr.mxu0 0.0
        %1731 = vmatpush1.xpose.msra.mxu0 0.0
        %1732 = vmatprep.subr.mxu0 0.0
        %1733 = vmatpush1.xpose.msra.mxu0 0.0
        %1734 = vmatprep.subr.mxu0 0.0
        %1735 = vmatpush1.xpose.msra.mxu0 0.0
        %1736 = vmatprep.subr.mxu0 0.0
        %1737 = vmatpush1.xpose.msra.mxu0 0.0
        %1738 = vmatprep.subr.mxu0 0.0
        %1739 = vmatpush1.xpose.msra.mxu0 0.0
        %1740 = vmatprep.subr.mxu0 0.0
        %1741 = vmatpush1.xpose.msra.mxu0 0.0
        %1742 = vmatprep.subr.mxu0 0.0
        %1743 = vmatpush1.xpose.msra.mxu0 0.0
        %1744 = vmatprep.subr.mxu0 0.0
        %1745 = vmatpush1.xpose.msra.mxu0 0.0
        %1746 = vmatprep.subr.mxu0 0.0
        %1747 = vmatpush1.xpose.msra.mxu0 0.0
        %1748 = vmatprep.subr.mxu0 0.0
        %1749 = vmatpush1.xpose.msra.mxu0 0.0
        %1750 = vmatprep.subr.mxu0 0.0
        %1751 = vmatpush1.xpose.msra.mxu0 0.0
        %1752 = vmatprep.subr.mxu0 0.0
        %1753 = vmatpush1.xpose.msra.mxu0 0.0
        %1754 = vmatprep.subr.mxu0 0.0
        %1755 = vmatpush1.xpose.msra.mxu0 0.0
        %1756 = vmatprep.subr.mxu0 0.0
        %1757 = vmatpush1.xpose.msra.mxu0 0.0
        %1758 = vmatprep.subr.mxu0 0.0
        %1759 = vmatpush1.xpose.msra.mxu0 0.0
        %1760 = vmatprep.subr.mxu0 0.0
        %1761 = vmatpush1.xpose.msra.mxu0 0.0
        %1762 = vmatprep.subr.mxu0 0.0
        %1763 = vmatpush1.xpose.msra.mxu0 0.0
        %1764 = vmatprep.subr.mxu0 0.0
        %1765 = vmatpush1.xpose.msra.mxu0 0.0
        %1766 = vmatprep.subr.mxu0 0.0
        %1767 = vmatpush1.xpose.msra.mxu0 0.0
        %1768 = vmatprep.mubr.f32.mxu0 0.0
        %1769 = vmatmul.mubr.f32.gmra.mrb[0].mxu0 %v1696
        %v1770 = vpop.f32.mrb[0].mxu0
        %v1771 = vadd.f32 0.0, %v1770
        %v1772 = vpop.f32.mrb[0].mxu0
        %1773 = vmatprep.mubr.f32.mxu0 0.0
        %1774 = vmatmul.mubr.f32.gmra.mrb[0].mxu0 %v1698
        %v1775 = vpop.f32.mrb[0].mxu0
        %v1776 = vadd.f32 0.0, %v1775
        %v1777 = vpop.f32.mrb[0].mxu0
        %1778 = vdwg.mxu0
        %v1779 = vmul.f32 %v1771, 0.35355338
        %v1780 = vmul.f32 %v1776, 0.35355338
        %v1781 = vsel %vm612, %v1779, -inf
        %1782 = vmax.xlane.f32.xlu0 %v1781
        %v1783 = vpop.xlane.xlu0 %1782
        %v1784 = vsel %vm612, %v1780, -inf
        %1785 = vmax.xlane.f32.xlu0 %v1784
        %v1786 = vpop.xlane.xlu0 %1785
        %v1787 = vsub.f32 %v1779, %v1783
        %v1788 = vsub.f32 %v1780, %v1786
        %v1789 = vmul.f32 %v1787, 1.442695
        %v1790 = vpow.pop %v1789
        %v1791 = vmul.f32 %v1788, 1.442695
        %v1792 = vpow.pop %v1791
        %v1793 = vsel %vm612, %v1790, 0.0
        %1794 = vadd.xlane.f32.xlu0 %v1793
        %v1795 = vpop.xlane.xlu0 %1794
        %v1796 = vsel %vm612, %v1792, 0.0
        %1797 = vadd.xlane.f32.xlu0 %v1796
        %v1798 = vpop.xlane.xlu0 %1797
        %v1799 = vrcp.pop %v1795
        %v1800 = vrcp.pop %v1798
        %v1801 = vmul.f32 %v1790, %v1799
        %v1802 = vmul.f32 %v1792, %v1800
        %v1803 = vrot.slane %v519, 6
        %v1804 = vsel %vm612, %v1803, 0
        %v1807 = vsel %vm612, %v1801, 0
        %v1810 = vsel %vm612, %v1802, 0
        %1812 = vmatprep.subr.mxu0 0.0
        %1813 = vmatpush1.xpose.msra.mxu0 %v1807
        %1814 = vmatprep.subr.mxu0 0.0
        %1815 = vmatpush1.xpose.msra.mxu0 %v1810
        %1816 = vmatprep.subr.mxu0 0.0
        %1817 = vmatpush1.xpose.msra.mxu0 0.0
        %1818 = vmatprep.subr.mxu0 0.0
        %1819 = vmatpush1.xpose.msra.mxu0 0.0
        %1820 = vmatprep.subr.mxu0 0.0
        %1821 = vmatpush1.xpose.msra.mxu0 0.0
        %1822 = vmatprep.subr.mxu0 0.0
        %1823 = vmatpush1.xpose.msra.mxu0 0.0
        %1824 = vmatprep.subr.mxu0 0.0
        %1825 = vmatpush1.xpose.msra.mxu0 0.0
        %1826 = vmatprep.subr.mxu0 0.0
        %1827 = vmatpush1.xpose.msra.mxu0 0.0
        %1828 = vmatprep.subr.mxu0 0.0
        %1829 = vmatpush1.xpose.msra.mxu0 0.0
        %1830 = vmatprep.subr.mxu0 0.0
        %1831 = vmatpush1.xpose.msra.mxu0 0.0
        %1832 = vmatprep.subr.mxu0 0.0
        %1833 = vmatpush1.xpose.msra.mxu0 0.0
        %1834 = vmatprep.subr.mxu0 0.0
        %1835 = vmatpush1.xpose.msra.mxu0 0.0
        %1836 = vmatprep.subr.mxu0 0.0
        %1837 = vmatpush1.xpose.msra.mxu0 0.0
        %1838 = vmatprep.subr.mxu0 0.0
        %1839 = vmatpush1.xpose.msra.mxu0 0.0
        %1840 = vmatprep.subr.mxu0 0.0
        %1841 = vmatpush1.xpose.msra.mxu0 0.0
        %1842 = vmatprep.subr.mxu0 0.0
        %1843 = vmatpush1.xpose.msra.mxu0 0.0
        %1844 = vmatprep.subr.mxu0 0.0
        %1845 = vmatpush1.xpose.msra.mxu0 0.0
        %1846 = vmatprep.subr.mxu0 0.0
        %1847 = vmatpush1.xpose.msra.mxu0 0.0
        %1848 = vmatprep.subr.mxu0 0.0
        %1849 = vmatpush1.xpose.msra.mxu0 0.0
        %1850 = vmatprep.subr.mxu0 0.0
        %1851 = vmatpush1.xpose.msra.mxu0 0.0
        %1852 = vmatprep.subr.mxu0 0.0
        %1853 = vmatpush1.xpose.msra.mxu0 0.0
        %1854 = vmatprep.subr.mxu0 0.0
        %1855 = vmatpush1.xpose.msra.mxu0 0.0
        %1856 = vmatprep.subr.mxu0 0.0
        %1857 = vmatpush1.xpose.msra.mxu0 0.0
        %1858 = vmatprep.subr.mxu0 0.0
        %1859 = vmatpush1.xpose.msra.mxu0 0.0
        %1860 = vmatprep.subr.mxu0 0.0
        %1861 = vmatpush1.xpose.msra.mxu0 0.0
        %1862 = vmatprep.subr.mxu0 0.0
        %1863 = vmatpush1.xpose.msra.mxu0 0.0
        %1864 = vmatprep.subr.mxu0 0.0
        %1865 = vmatpush1.xpose.msra.mxu0 0.0
        %1866 = vmatprep.subr.mxu0 0.0
        %1867 = vmatpush1.xpose.msra.mxu0 0.0
        %1868 = vmatprep.subr.mxu0 0.0
        %1869 = vmatpush1.xpose.msra.mxu0 0.0
        %1870 = vmatprep.subr.mxu0 0.0
        %1871 = vmatpush1.xpose.msra.mxu0 0.0
        %1872 = vmatprep.subr.mxu0 0.0
        %1873 = vmatpush1.xpose.msra.mxu0 0.0
        %1874 = vmatprep.subr.mxu0 0.0
        %1875 = vmatpush1.xpose.msra.mxu0 0.0
        %1876 = vmatprep.mubr.f32.mxu0 0.0
        %1877 = vmatmul.mubr.f32.gmra.mrb[0].mxu0 %v1804
        %v1878 = vpop.f32.mrb[0].mxu0
        %v1879 = vadd.f32 0.0, %v1878
        %v1880 = vpop.f32.mrb[0].mxu0
        %1881 = vdwg.mxu0
        %v1882 = vadd.f32 %v1685, %v1879
        %1883 = vrot.lane.b32.xlu0 %v361, 72
        %v1884 = vpop.permute.xlu0 %1883
        %1885 = vrot.lane.b32.xlu0 %v366, 72
        %v1886 = vpop.permute.xlu0 %1885
        %1887 = vrot.lane.b32.xlu0 %v440, 72
        %v1888 = vpop.permute.xlu0 %1887
        %1889 = vrot.lane.b32.xlu0 %v445, 72
        %v1890 = vpop.permute.xlu0 %1889
        %v1891 = vsel %vm522, %v1884, 0
        %v1893 = vsel %vm522, %v1886, 0
        %v1895 = vsel %vm522, %v1888, 0
        %v1897 = vsel %vm522, %v1890, 0
        %1899 = vmatprep.subr.mxu0 0.0
        %1900 = vmatpush1.xpose.msra.mxu0 %v1895
        %1901 = vmatprep.subr.mxu0 0.0
        %1902 = vmatpush1.xpose.msra.mxu0 %v1897
        %1903 = vmatprep.subr.mxu0 0.0
        %1904 = vmatpush1.xpose.msra.mxu0 0.0
        %1905 = vmatprep.subr.mxu0 0.0
        %1906 = vmatpush1.xpose.msra.mxu0 0.0
        %1907 = vmatprep.subr.mxu0 0.0
        %1908 = vmatpush1.xpose.msra.mxu0 0.0
        %1909 = vmatprep.subr.mxu0 0.0
        %1910 = vmatpush1.xpose.msra.mxu0 0.0
        %1911 = vmatprep.subr.mxu0 0.0
        %1912 = vmatpush1.xpose.msra.mxu0 0.0
        %1913 = vmatprep.subr.mxu0 0.0
        %1914 = vmatpush1.xpose.msra.mxu0 0.0
        %1915 = vmatprep.subr.mxu0 0.0
        %1916 = vmatpush1.xpose.msra.mxu0 0.0
        %1917 = vmatprep.subr.mxu0 0.0
        %1918 = vmatpush1.xpose.msra.mxu0 0.0
        %1919 = vmatprep.subr.mxu0 0.0
        %1920 = vmatpush1.xpose.msra.mxu0 0.0
        %1921 = vmatprep.subr.mxu0 0.0
        %1922 = vmatpush1.xpose.msra.mxu0 0.0
        %1923 = vmatprep.subr.mxu0 0.0
        %1924 = vmatpush1.xpose.msra.mxu0 0.0
        %1925 = vmatprep.subr.mxu0 0.0
        %1926 = vmatpush1.xpose.msra.mxu0 0.0
        %1927 = vmatprep.subr.mxu0 0.0
        %1928 = vmatpush1.xpose.msra.mxu0 0.0
        %1929 = vmatprep.subr.mxu0 0.0
        %1930 = vmatpush1.xpose.msra.mxu0 0.0
        %1931 = vmatprep.subr.mxu0 0.0
        %1932 = vmatpush1.xpose.msra.mxu0 0.0
        %1933 = vmatprep.subr.mxu0 0.0
        %1934 = vmatpush1.xpose.msra.mxu0 0.0
        %1935 = vmatprep.subr.mxu0 0.0
        %1936 = vmatpush1.xpose.msra.mxu0 0.0
        %1937 = vmatprep.subr.mxu0 0.0
        %1938 = vmatpush1.xpose.msra.mxu0 0.0
        %1939 = vmatprep.subr.mxu0 0.0
        %1940 = vmatpush1.xpose.msra.mxu0 0.0
        %1941 = vmatprep.subr.mxu0 0.0
        %1942 = vmatpush1.xpose.msra.mxu0 0.0
        %1943 = vmatprep.subr.mxu0 0.0
        %1944 = vmatpush1.xpose.msra.mxu0 0.0
        %1945 = vmatprep.subr.mxu0 0.0
        %1946 = vmatpush1.xpose.msra.mxu0 0.0
        %1947 = vmatprep.subr.mxu0 0.0
        %1948 = vmatpush1.xpose.msra.mxu0 0.0
        %1949 = vmatprep.subr.mxu0 0.0
        %1950 = vmatpush1.xpose.msra.mxu0 0.0
        %1951 = vmatprep.subr.mxu0 0.0
        %1952 = vmatpush1.xpose.msra.mxu0 0.0
        %1953 = vmatprep.subr.mxu0 0.0
        %1954 = vmatpush1.xpose.msra.mxu0 0.0
        %1955 = vmatprep.subr.mxu0 0.0
        %1956 = vmatpush1.xpose.msra.mxu0 0.0
        %1957 = vmatprep.subr.mxu0 0.0
        %1958 = vmatpush1.xpose.msra.mxu0 0.0
        %1959 = vmatprep.subr.mxu0 0.0
        %1960 = vmatpush1.xpose.msra.mxu0 0.0
        %1961 = vmatprep.subr.mxu0 0.0
        %1962 = vmatpush1.xpose.msra.mxu0 0.0
        %1963 = vmatprep.mubr.f32.mxu0 0.0
        %1964 = vmatmul.mubr.f32.gmra.mrb[0].mxu0 %v1891
        %v1965 = vpop.f32.mrb[0].mxu0
        %v1966 = vadd.f32 0.0, %v1965
        %v1967 = vpop.f32.mrb[0].mxu0
        %1968 = vmatprep.mubr.f32.mxu0 0.0
        %1969 = vmatmul.mubr.f32.gmra.mrb[0].mxu0 %v1893
        %v1970 = vpop.f32.mrb[0].mxu0
        %v1971 = vadd.f32 0.0, %v1970
        %v1972 = vpop.f32.mrb[0].mxu0
        %1973 = vdwg.mxu0
        %v1974 = vmul.f32 %v1966, 0.35355338
        %v1975 = vmul.f32 %v1971, 0.35355338
        %v1976 = vsel %vm612, %v1974, -inf
        %1977 = vmax.xlane.f32.xlu0 %v1976
        %v1978 = vpop.xlane.xlu0 %1977
        %v1979 = vsel %vm612, %v1975, -inf
        %1980 = vmax.xlane.f32.xlu0 %v1979
        %v1981 = vpop.xlane.xlu0 %1980
        %v1982 = vsub.f32 %v1974, %v1978
        %v1983 = vsub.f32 %v1975, %v1981
        %v1984 = vmul.f32 %v1982, 1.442695
        %v1985 = vpow.pop %v1984
        %v1986 = vmul.f32 %v1983, 1.442695
        %v1987 = vpow.pop %v1986
        %v1988 = vsel %vm612, %v1985, 0.0
        %1989 = vadd.xlane.f32.xlu0 %v1988
        %v1990 = vpop.xlane.xlu0 %1989
        %v1991 = vsel %vm612, %v1987, 0.0
        %1992 = vadd.xlane.f32.xlu0 %v1991
        %v1993 = vpop.xlane.xlu0 %1992
        %v1994 = vrcp.pop %v1990
        %v1995 = vrcp.pop %v1993
        %v1996 = vmul.f32 %v1985, %v1994
        %v1997 = vmul.f32 %v1987, %v1995
        %v1998 = vrot.slane %v519, 7
        %v1999 = vsel %vm612, %v1998, 0
        %v2002 = vsel %vm612, %v1996, 0
        %v2005 = vsel %vm612, %v1997, 0
        %2007 = vmatprep.subr.mxu0 0.0
        %2008 = vmatpush1.xpose.msra.mxu0 %v2002
        %2009 = vmatprep.subr.mxu0 0.0
        %2010 = vmatpush1.xpose.msra.mxu0 %v2005
        %2011 = vmatprep.subr.mxu0 0.0
        %2012 = vmatpush1.xpose.msra.mxu0 0.0
        %2013 = vmatprep.subr.mxu0 0.0
        %2014 = vmatpush1.xpose.msra.mxu0 0.0
        %2015 = vmatprep.subr.mxu0 0.0
        %2016 = vmatpush1.xpose.msra.mxu0 0.0
        %2017 = vmatprep.subr.mxu0 0.0
        %2018 = vmatpush1.xpose.msra.mxu0 0.0
        %2019 = vmatprep.subr.mxu0 0.0
        %2020 = vmatpush1.xpose.msra.mxu0 0.0
        %2021 = vmatprep.subr.mxu0 0.0
        %2022 = vmatpush1.xpose.msra.mxu0 0.0
        %2023 = vmatprep.subr.mxu0 0.0
        %2024 = vmatpush1.xpose.msra.mxu0 0.0
        %2025 = vmatprep.subr.mxu0 0.0
        %2026 = vmatpush1.xpose.msra.mxu0 0.0
        %2027 = vmatprep.subr.mxu0 0.0
        %2028 = vmatpush1.xpose.msra.mxu0 0.0
        %2029 = vmatprep.subr.mxu0 0.0
        %2030 = vmatpush1.xpose.msra.mxu0 0.0
        %2031 = vmatprep.subr.mxu0 0.0
        %2032 = vmatpush1.xpose.msra.mxu0 0.0
        %2033 = vmatprep.subr.mxu0 0.0
        %2034 = vmatpush1.xpose.msra.mxu0 0.0
        %2035 = vmatprep.subr.mxu0 0.0
        %2036 = vmatpush1.xpose.msra.mxu0 0.0
        %2037 = vmatprep.subr.mxu0 0.0
        %2038 = vmatpush1.xpose.msra.mxu0 0.0
        %2039 = vmatprep.subr.mxu0 0.0
        %2040 = vmatpush1.xpose.msra.mxu0 0.0
        %2041 = vmatprep.subr.mxu0 0.0
        %2042 = vmatpush1.xpose.msra.mxu0 0.0
        %2043 = vmatprep.subr.mxu0 0.0
        %2044 = vmatpush1.xpose.msra.mxu0 0.0
        %2045 = vmatprep.subr.mxu0 0.0
        %2046 = vmatpush1.xpose.msra.mxu0 0.0
        %2047 = vmatprep.subr.mxu0 0.0
        %2048 = vmatpush1.xpose.msra.mxu0 0.0
        %2049 = vmatprep.subr.mxu0 0.0
        %2050 = vmatpush1.xpose.msra.mxu0 0.0
        %2051 = vmatprep.subr.mxu0 0.0
        %2052 = vmatpush1.xpose.msra.mxu0 0.0
        %2053 = vmatprep.subr.mxu0 0.0
        %2054 = vmatpush1.xpose.msra.mxu0 0.0
        %2055 = vmatprep.subr.mxu0 0.0
        %2056 = vmatpush1.xpose.msra.mxu0 0.0
        %2057 = vmatprep.subr.mxu0 0.0
        %2058 = vmatpush1.xpose.msra.mxu0 0.0
        %2059 = vmatprep.subr.mxu0 0.0
        %2060 = vmatpush1.xpose.msra.mxu0 0.0
        %2061 = vmatprep.subr.mxu0 0.0
        %2062 = vmatpush1.xpose.msra.mxu0 0.0
        %2063 = vmatprep.subr.mxu0 0.0
        %2064 = vmatpush1.xpose.msra.mxu0 0.0
        %2065 = vmatprep.subr.mxu0 0.0
        %2066 = vmatpush1.xpose.msra.mxu0 0.0
        %2067 = vmatprep.subr.mxu0 0.0
        %2068 = vmatpush1.xpose.msra.mxu0 0.0
        %2069 = vmatprep.subr.mxu0 0.0
        %2070 = vmatpush1.xpose.msra.mxu0 0.0
        %2071 = vmatprep.mubr.f32.mxu0 0.0
        %2072 = vmatmul.mubr.f32.gmra.mrb[0].mxu0 %v1999
        %v2073 = vpop.f32.mrb[0].mxu0
        %v2074 = vadd.f32 0.0, %v2073
        %v2075 = vpop.f32.mrb[0].mxu0
        %2076 = vdwg.mxu0
        %v2077 = vadd.f32 %v1882, %v2074
        %2078 = vst.msk [vmem:[%s280] sm:$0x1] %vm1298, %v2077
        %s2079 = sand.u32 %s124, 1
        %s2080 = scalar_lea.sflag [#allocation4], %s2079
        %s2081 = sand.u32 %s124, 1
        %s2082 = scalar_lea.vmem [#allocation8], %s2081
        %s2083 = sand.u32 %s150, 1
        %s2084 = scalar_lea.sflag [#allocation10], %s2083
        %s2085 = sand.u32 %s150, 1
        %s2086 = scalar_lea.vmem [#allocation9], %s2085
        // Predicated region
        $region49: #{tpu_custom_call.1} parent=35 // pred_check
          %p2087 = pneg %p134
        $region50: #{tpu_custom_call.1} parent=35 // pred_check_branch
          %2089 = sbr.rel (%p2087) target = $region52
        $region51: #{tpu_custom_call.1} parent=35 // pred_region
          %s2091 = ssub.s32 16, 16
          %2092 = vsyncadd %s2080, %s2091
          %s2093 = smul.addr %s27, 16
          %s2094 = scalar_lea.hbm %s4, %s2093
          %s2096 = sshll.u32 %s2082, 4
          %s2097 = int_to_ptr.vmem [resolvable:$true] %s2096
          %2099 = dma.vmem_to_hbm [thread:$0]  %s2097, 16, %s2094, %s2080
        $region52: #{tpu_custom_call.1} parent=35 // pred_fallthru
          _
        // Predicated region
        $region53: #{tpu_custom_call.1} parent=35 // pred_check
          %p2100 = pneg %p160
        $region54: #{tpu_custom_call.1} parent=35 // pred_check_branch
          %2102 = sbr.rel (%p2100) target = $region56
        $region55: #{tpu_custom_call.1} parent=35 // pred_region
          %s2104 = ssub.s32 16, 16
          %2105 = vsyncadd %s2084, %s2104
          %s2106 = smul.addr %s27, 16
          %s2107 = scalar_lea.hbm %s5, %s2106
          %s2109 = sshll.u32 %s2086, 4
          %s2110 = int_to_ptr.vmem [resolvable:$true] %s2109
          %2112 = dma.vmem_to_hbm [thread:$0]  %s2110, 16, %s2107, %s2084
        $region56: #{tpu_custom_call.1} parent=35 // pred_fallthru
          _
      $region36: #{tpu_custom_call.1} parent=5 // pred_fallthru
        _
      %p2113 = scmp.le.s32.totalorder 2, %s22
      // Predicated region
      $region57: #{tpu_custom_call.1} parent=5 // pred_check
        %p2114 = pneg %p2113
      $region58: #{tpu_custom_call.1} parent=5 // pred_check_branch
        %2116 = sbr.rel (%p2114) target = $region60
      $region59: #{tpu_custom_call.1} parent=5 // pred_region
        %s2117 = ssub.s32 %s22, 2
        // Predicated region
        $region61: #{tpu_custom_call.1} parent=59 // pred_check
          %p2118 = pneg %p140
        $region62: #{tpu_custom_call.1} parent=59 // pred_check_branch
          %2120 = sbr.rel (%p2118) target = $region64
        $region63: #{tpu_custom_call.1} parent=59 // pred_region
          %s2121 = sand.u32 %s125, 1
          %s2122 = scalar_lea.sflag [#allocation4], %s2121
          %s2123 = sand.u32 %s125, 1
          %s2124 = scalar_lea.vmem [#allocation8], %s2123
          %2125 = dma.done %s2122, 16
        $region64: #{tpu_custom_call.1} parent=59 // pred_fallthru
          _
        // Predicated region
        $region65: #{tpu_custom_call.1} parent=59 // pred_check
          %p2126 = pneg %p166
        $region66: #{tpu_custom_call.1} parent=59 // pred_check_branch
          %2128 = sbr.rel (%p2126) target = $region68
        $region67: #{tpu_custom_call.1} parent=59 // pred_region
          %s2129 = sand.u32 %s151, 1
          %s2130 = scalar_lea.sflag [#allocation10], %s2129
          %s2131 = sand.u32 %s151, 1
          %s2132 = scalar_lea.vmem [#allocation9], %s2131
          %2133 = dma.done %s2130, 16
        $region68: #{tpu_custom_call.1} parent=59 // pred_fallthru
          _
      $region60: #{tpu_custom_call.1} parent=5 // pred_fallthru
        _
    $region6: #{tpu_custom_call.1} parent=1 // loop_footer
      %s26 = sadd.s32 1, %s22
    $region7: #{tpu_custom_call.1} parent=1 // loop_footer_branch
      %21 = sbr.rel target = $region3
    $region8: #{tpu_custom_call.1} parent=1 // loop_exit
      _
    %2134 = vsyncpa [#allocation3], 1
    %s2135 = scalar_lea.sflag [#allocation3], 1
    %2136 = vsyncpa %s2135, 1
    %2137 = vsyncpa [#allocation6], 1
    %2138 = vsyncpa [#allocation4], 1
    %s2139 = scalar_lea.sflag [#allocation4], 1
    %2140 = vsyncpa %s2139, 1
    %2141 = vsyncpa [#allocation10], 1
    %s2142 = scalar_lea.sflag [#allocation10], 1
    %2143 = vsyncpa %s2142, 1

</llo_original>
